<compile_context>
chip_gen: v7x
topology: tpu7x:2x2x1
jax: 0.10.0
libtpu: 0.0.40
codegen_flags: <defaults>
</compile_context>

<pallas_src>
import functools

import jax
import jax.numpy as jnp
from jax import lax
from jax.experimental import pallas as pl
from jax.experimental.pallas import tpu as pltpu


def _round_up(x, m):
    return (x + m - 1) // m * m


def _intra_con_loss_kernel(feat_ref, out_ref, *, temperature, batch_size,
                           block_m, need_mask, exp_in_bf16):
    """One anchor-row tile.

    feat_ref : VMEM [V, B_pad, D_pad] (f32 or bf16) -- full feature table.
    out_ref  : VMEM [1, 8, 128] f32 -- per-tile partial loss, broadcast into
               one lane-dense vreg tile (trivially legal, parallel-safe).
    """
    V, B_pad, D_pad = feat_ref.shape
    inv_temp = jnp.float32(1.0 / temperature)
    eps = jnp.float32(1e-6)
    neg_big = jnp.float32(-1e30)

    i = pl.program_id(0)
    row0 = pl.multiple_of(i * block_m, block_m)

    if need_mask:
        # Small (1, B_pad) / (block_m, 1) validity masks -- never (B, B).
        col_valid = lax.broadcasted_iota(jnp.int32, (1, B_pad), 1) < batch_size
        row_valid = (lax.broadcasted_iota(jnp.int32, (block_m, 1), 0)
                     + row0) < batch_size

    # Hoisted row-tile loads/casts (once per grid step, reused across pairs).
    # 1/temperature is folded into the anchor-side tile here: a (block_m,D_pad)
    # VPU pass instead of scaling every (block_m, B_pad) logits block.
    rows_f32 = [feat_ref[v, pl.ds(row0, block_m), :].astype(jnp.float32)
                for v in range(V)]
    rows_scaled_f32 = [r * inv_temp for r in rows_f32]
    rows_scaled_mm = [r.astype(feat_ref.dtype) for r in rows_scaled_f32]

    # Positive term = diag(anchor @ contrast.T)/T as an elementwise row-dot.
    # Symmetric in (v, c): compute once per unordered pair and reuse.
    pos = {}
    for v in range(V):
        for c in range(v + 1, V):
            p = jnp.sum(rows_scaled_f32[v] * rows_f32[c], axis=1, keepdims=True)
            pos[(v, c)] = p
            pos[(c, v)] = p

    tile_loss = jnp.zeros((block_m, 1), jnp.float32)
    for view in range(V):                                   # V small & static
        anchor = rows_scaled_mm[view]                       # (TM, D_pad), /T
        pos_sum = jnp.zeros((block_m, 1), jnp.float32)
        neg_sum = jnp.zeros((block_m, 1), jnp.float32)
        for con in range(1, V):
            c = (view + con) % V
            # Per-pair matmul: (TM, D_pad) x (B_pad, D_pad)^T -> (TM, B_pad),
            # f32 accumulation on the MXU; consumed immediately.
            block = lax.dot_general(
                anchor, feat_ref[c],
                dimension_numbers=(((1,), (1,)), ((), ())),
                preferred_element_type=jnp.float32,
            )
            if need_mask:
                # Exclude padded contrast columns from max and exp-sum.
                block = jnp.where(col_valid, block, neg_big)
            block_max = jnp.max(block, axis=1, keepdims=True)
            pos_sum += pos[(view, c)] - block_max

            shifted = block - block_max
            if exp_in_bf16:
                # v6e/v7x EUP bf16 path (inputs <= 0, results in [0, 1]);
                # the exp-sum accumulator stays in f32.
                exp_vals = jnp.exp(shifted.astype(jnp.bfloat16)).astype(
                    jnp.float32)
            else:
                exp_vals = jnp.exp(shifted)
            neg_sum += jnp.sum(exp_vals, axis=1, keepdims=True)

        tile_loss += pos_sum - 2.0 * jnp.log(neg_sum + eps)

    if need_mask:
        tile_loss = jnp.where(row_valid, tile_loss, 0.0)

    out_ref[...] = jnp.full((1, 8, 128), jnp.sum(tile_loss), dtype=jnp.float32)


def intra_con_loss(features, temperature=0.07, base_temperature=0.07, *,
                   matmul_dtype=jnp.bfloat16, block_m=None, exp_in_bf16=False):
    """features: [V, B, D] stacked views (f32). Returns scalar f32 loss.

    matmul_dtype=bfloat16 is the recommended default (esp. on v5e, whose MXU
    is bf16-native).  exp_in_bf16 is an optional v6e/v7x-only EUP speedup;
    keep it False on v5e.  Note: in the bf16 path the diagonal logit inside
    the exp-sum comes from the bf16 MXU while the positive term uses an f32
    VPU row-dot (documented mixed-precision asymmetry, within tolerance).
    """
    features = jnp.asarray(features, jnp.float32)
    V, B, D = features.shape

    # Row tiling.  Default <=128 rows/tile; for B >= 16 aim for at least two
    # tiles so both v7x TensorCores get work on the "parallel" grid axis.
    if block_m is None:
        if B >= 16:
            block_m = min(128, _round_up((B + 1) // 2, 8))
        else:
            block_m = _round_up(B, 8)
    block_m = max(8, _round_up(int(block_m), 8))
    B_pad = _round_up(B, block_m)
    num_tiles = B_pad // block_m
    need_mask = B_pad != B

    # Lane-dense feature dim (zero padding is numerically neutral for dots).
    D_pad = _round_up(max(D, 128), 128)

    pad_b, pad_d = B_pad - B, D_pad - D
    if pad_b or pad_d:
        features = jnp.pad(features, ((0, 0), (0, pad_b), (0, pad_d)))
    feats_in = features.astype(matmul_dtype)
    itemsize = jnp.dtype(matmul_dtype).itemsize

    kernel = functools.partial(
        _intra_con_loss_kernel,
        temperature=float(temperature),
        batch_size=B,
        block_m=block_m,
        need_mask=need_mask,
        exp_in_bf16=bool(exp_in_bf16),
    )

    # VMEM budget (conservative: allows for the double-buffered fallback of
    # the table): resident feature table, one per-pair f32 logits block plus
    # exp/mask temps, hoisted row tiles, fixed headroom.
    table_bytes = V * B_pad * D_pad * itemsize
    vmem_estimate = (2 * table_bytes
                     + 4 * block_m * B_pad * 4
                     + 4 * V * block_m * D_pad * 4
                     + (2 << 20))
    # Clamp to the actual chip VMEM (v7x: 64 MiB) minus headroom; never
    # request more than physically exists.
    vmem_cap = 64 << 20
    try:
        vmem_cap = int(pltpu.get_tpu_info().vmem_capacity_bytes)
    except Exception:
        pass
    vmem_ceiling = max(vmem_cap - (16 << 20), 16 << 20)
    vmem_limit = int(min(max(vmem_estimate, 4 << 20), vmem_ceiling))

    cost = pl.CostEstimate(
        flops=2 * V * (V - 1) * B_pad * B_pad * D_pad,
        transcendentals=V * (V - 1) * B_pad * B_pad + V * B_pad,
        bytes_accessed=table_bytes + num_tiles * 8 * 128 * 4,
    )

    def _call(single_buffer_table):
        in_spec_kwargs = {}
        if single_buffer_table:
            # Constant index_map -> the second pipeline buffer is never used;
            # single-buffering halves the resident table footprint (v7x VMEM).
            in_spec_kwargs["pipeline_mode"] = pl.Buffered(1)
        return pl.pallas_call(
            kernel,
            grid=(num_tiles,),
            in_specs=[pl.BlockSpec((V, B_pad, D_pad), lambda i: (0, 0, 0),
                                   **in_spec_kwargs)],
            out_specs=pl.BlockSpec((1, 8, 128), lambda i: (i, 0, 0)),
            out_shape=jax.ShapeDtypeStruct((num_tiles, 8, 128), jnp.float32),
            compiler_params=pltpu.CompilerParams(
                dimension_semantics=("parallel",),  # v7x: tiles split over TCs
                vmem_limit_bytes=vmem_limit,
            ),
            cost_estimate=cost,
        )(feats_in)

    try:
        partials = _call(True)
    except Exception:
        # Some JAX versions reject Buffered(1) on a top-level BlockSpec;
        # fall back to the default (double-buffered) pipeline.
        partials = _call(False)

    total = jnp.sum(partials[:, 0, 0])
    return -(temperature / base_temperature) * total / jnp.float32(B)


def intra_con_loss_ref(features, temperature=0.07, base_temperature=0.07):
    """Pure-JAX reference mirroring the PyTorch forward."""
    V, B, D = features.shape
    eps = 1e-6
    diag_mask = jnp.eye(B, dtype=jnp.float32)
    loss = 0.0
    for view in range(V):
        anchor = features[view]
        pos_sim_all = 0.0
        neg_exp_sim_all = 0.0
        for con in range(1, V):
            view_tmp = (view + con) % V
            contrast = features[view_tmp]
            adc = (anchor @ contrast.T) / temperature
            adc = adc - jnp.max(adc, axis=1, keepdims=True)
            pos_sim_all = pos_sim_all + (diag_mask * adc).sum(1)
            neg_exp_sim_all = neg_exp_sim_all + jnp.exp(adc).sum(1)
        l_tmp = pos_sim_all - 2.0 * jnp.log(neg_exp_sim_all + eps)
        loss = loss + l_tmp.sum(0)
    return -(temperature / base_temperature) * loss / B


if __name__ == "__main__":
    key = jax.random.PRNGKey(0)
    k1, k2 = jax.random.split(key)

    # Case 1: 3 views, batch=8, dim=32 (single tile, D padded to 128 lanes).
    V, B, D = 3, 8, 32
    feats = jax.random.normal(k1, (V, B, D), dtype=jnp.float32)
    feats = feats / jnp.linalg.norm(feats, axis=-1, keepdims=True)
    ref = intra_con_loss_ref(feats)

    loss_f32 = intra_con_loss(feats, matmul_dtype=jnp.float32)
    jax.block_until_ready(loss_f32)
    assert jnp.allclose(loss_f32, ref, rtol=1e-3, atol=1e-3), (loss_f32, ref)

    loss_bf16 = intra_con_loss(feats, matmul_dtype=jnp.bfloat16)
    jax.block_until_ready(loss_bf16)
    assert jnp.allclose(loss_bf16, ref, rtol=5e-2, atol=5e-2), (loss_bf16, ref)

    # Case 2: batch not a multiple of the tile -> padding/masking and a
    # multi-step "parallel" grid; also exercises the auto block_m path.
    V2, B2, D2 = 3, 20, 32
    feats2 = jax.random.normal(k2, (V2, B2, D2), dtype=jnp.float32)
    feats2 = feats2 / jnp.linalg.norm(feats2, axis=-1, keepdims=True)
    ref2 = intra_con_loss_ref(feats2)

    loss2 = intra_con_loss(feats2, matmul_dtype=jnp.float32, block_m=8)
    jax.block_until_ready(loss2)
    assert jnp.allclose(loss2, ref2, rtol=1e-3, atol=1e-3), (loss2, ref2)

    loss2_auto = intra_con_loss(feats2, matmul_dtype=jnp.float32)
    jax.block_until_ready(loss2_auto)
    assert jnp.allclose(loss2_auto, ref2, rtol=1e-3, atol=1e-3), (loss2_auto,
                                                                  ref2)

    # Optional bf16-exp path (off by default; intended for v6e/v7x).
    loss2_bf16exp = intra_con_loss(feats2, matmul_dtype=jnp.bfloat16,
                                   exp_in_bf16=True)
    jax.block_until_ready(loss2_bf16exp)
    assert jnp.allclose(loss2_bf16exp, ref2, rtol=5e-2, atol=5e-2), (
        loss2_bf16exp, ref2)

    print("KERNEL_OK")
</pallas_src>

<mosaic_0001>
module attributes {stable_mosaic.version = 11 : i64} {
  func.func @_intra_con_loss_kernel(%arg0: i32, %arg1: memref<3x8x128xf32, #tpu.memory_space<vmem>>, %arg2: memref<1x8x128xf32, #tpu.memory_space<vmem>>) attributes {dimension_semantics = [#tpu.dimension_semantics<parallel>], iteration_bounds = array<i64: 1>, scalar_prefetch = 0 : i64, scratch_operands = 0 : i64, tpu.core_type = #tpu.core_type<tc>, window_params = [{pipeline_mode = #tpu.pipeline_mode<synchronous>, transform_indices = @transform_0, window_bounds = array<i64: 3, 8, 128>}, {transform_indices = @transform_1, window_bounds = array<i64: 1, 8, 128>}]} {
    %c8_i32 = arith.constant 8 : i32
    %0 = arith.muli %arg0, %c8_i32 : i32
    %1 = tpu.assume_multiple %0, 8 : i32
    %c0 = arith.constant 0 : index
    %2 = arith.index_cast %1 : i32 to index
    %c0_0 = arith.constant 0 : index
    %3 = vector.load %arg1[%c0, %2, %c0_0] : memref<3x8x128xf32, #tpu.memory_space<vmem>>, vector<1x8x128xf32>
    %4 = vector.shape_cast %3 : vector<1x8x128xf32> to vector<8x128xf32>
    %c1 = arith.constant 1 : index
    %5 = arith.index_cast %1 : i32 to index
    %c0_1 = arith.constant 0 : index
    %6 = vector.load %arg1[%c1, %5, %c0_1] : memref<3x8x128xf32, #tpu.memory_space<vmem>>, vector<1x8x128xf32>
    %7 = vector.shape_cast %6 : vector<1x8x128xf32> to vector<8x128xf32>
    %c2 = arith.constant 2 : index
    %8 = arith.index_cast %1 : i32 to index
    %c0_2 = arith.constant 0 : index
    %9 = vector.load %arg1[%c2, %8, %c0_2] : memref<3x8x128xf32, #tpu.memory_space<vmem>>, vector<1x8x128xf32>
    %10 = vector.shape_cast %9 : vector<1x8x128xf32> to vector<8x128xf32>
    %cst = arith.constant 14.2857141 : f32
    %11 = vector.broadcast %cst : f32 to vector<8x128xf32>
    %12 = arith.mulf %4, %11 : vector<8x128xf32>
    %cst_3 = arith.constant 14.2857141 : f32
    %13 = vector.broadcast %cst_3 : f32 to vector<8x128xf32>
    %14 = arith.mulf %7, %13 : vector<8x128xf32>
    %cst_4 = arith.constant 14.2857141 : f32
    %15 = vector.broadcast %cst_4 : f32 to vector<8x128xf32>
    %16 = arith.mulf %10, %15 : vector<8x128xf32>
    %17 = arith.mulf %12, %7 : vector<8x128xf32>
    %cst_5 = arith.constant dense<0.000000e+00> : vector<8xf32>
    %18 = vector.multi_reduction <add>, %17, %cst_5 [1] : vector<8x128xf32> to vector<8xf32>
    %19 = vector.shape_cast %18 : vector<8xf32> to vector<8x1xf32>
    %20 = arith.mulf %12, %10 : vector<8x128xf32>
    %cst_6 = arith.constant dense<0.000000e+00> : vector<8xf32>
    %21 = vector.multi_reduction <add>, %20, %cst_6 [1] : vector<8x128xf32> to vector<8xf32>
    %22 = vector.shape_cast %21 : vector<8xf32> to vector<8x1xf32>
    %23 = arith.mulf %14, %10 : vector<8x128xf32>
    %cst_7 = arith.constant dense<0.000000e+00> : vector<8xf32>
    %24 = vector.multi_reduction <add>, %23, %cst_7 [1] : vector<8x128xf32> to vector<8xf32>
    %25 = vector.shape_cast %24 : vector<8xf32> to vector<8x1xf32>
    %cst_8 = arith.constant 0.000000e+00 : f32
    %26 = vector.broadcast %cst_8 : f32 to vector<8x1xf32>
    %cst_9 = arith.constant 0.000000e+00 : f32
    %27 = vector.broadcast %cst_9 : f32 to vector<8x1xf32>
    %cst_10 = arith.constant 0.000000e+00 : f32
    %28 = vector.broadcast %cst_10 : f32 to vector<8x1xf32>
    %c1_11 = arith.constant 1 : index
    %c0_12 = arith.constant 0 : index
    %c0_13 = arith.constant 0 : index
    %29 = vector.load %arg1[%c1_11, %c0_12, %c0_13] : memref<3x8x128xf32, #tpu.memory_space<vmem>>, vector<1x8x128xf32>
    %30 = vector.shape_cast %29 : vector<1x8x128xf32> to vector<8x128xf32>
    %cst_14 = arith.constant dense<0.000000e+00> : vector<8x8xf32>
    %31 = tpu.matmul %12, %30, %cst_14 {dimension_numbers = #tpu.dot_dimension_numbers<[1], [1], [0], [0], [0, 0, 1, 0], [], []>} : vector<8x128xf32>, vector<8x128xf32>, vector<8x8xf32> -> vector<8x8xf32>
    %cst_15 = arith.constant dense<0xFF800000> : vector<8xf32>
    %32 = vector.multi_reduction <maximumf>, %31, %cst_15 [1] : vector<8x8xf32> to vector<8xf32>
    %33 = vector.shape_cast %32 : vector<8xf32> to vector<8x1xf32>
    %34 = arith.subf %19, %33 : vector<8x1xf32>
    %35 = arith.addf %27, %34 : vector<8x1xf32>
    %36 = vector.broadcast %33 : vector<8x1xf32> to vector<8x8xf32>
    %37 = arith.subf %31, %36 : vector<8x8xf32>
    %38 = math.exp %37 : vector<8x8xf32>
    %cst_16 = arith.constant dense<0.000000e+00> : vector<8xf32>
    %39 = vector.multi_reduction <add>, %38, %cst_16 [1] : vector<8x8xf32> to vector<8xf32>
    %40 = vector.shape_cast %39 : vector<8xf32> to vector<8x1xf32>
    %41 = arith.addf %28, %40 : vector<8x1xf32>
    %c2_17 = arith.constant 2 : index
    %c0_18 = arith.constant 0 : index
    %c0_19 = arith.constant 0 : index
    %42 = vector.load %arg1[%c2_17, %c0_18, %c0_19] : memref<3x8x128xf32, #tpu.memory_space<vmem>>, vector<1x8x128xf32>
    %43 = vector.shape_cast %42 : vector<1x8x128xf32> to vector<8x128xf32>
    %cst_20 = arith.constant dense<0.000000e+00> : vector<8x8xf32>
    %44 = tpu.matmul %12, %43, %cst_20 {dimension_numbers = #tpu.dot_dimension_numbers<[1], [1], [0], [0], [0, 0, 1, 0], [], []>} : vector<8x128xf32>, vector<8x128xf32>, vector<8x8xf32> -> vector<8x8xf32>
    %cst_21 = arith.constant dense<0xFF800000> : vector<8xf32>
    %45 = vector.multi_reduction <maximumf>, %44, %cst_21 [1] : vector<8x8xf32> to vector<8xf32>
    %46 = vector.shape_cast %45 : vector<8xf32> to vector<8x1xf32>
    %47 = arith.subf %22, %46 : vector<8x1xf32>
    %48 = arith.addf %35, %47 : vector<8x1xf32>
    %49 = vector.broadcast %46 : vector<8x1xf32> to vector<8x8xf32>
    %50 = arith.subf %44, %49 : vector<8x8xf32>
    %51 = math.exp %50 : vector<8x8xf32>
    %cst_22 = arith.constant dense<0.000000e+00> : vector<8xf32>
    %52 = vector.multi_reduction <add>, %51, %cst_22 [1] : vector<8x8xf32> to vector<8xf32>
    %53 = vector.shape_cast %52 : vector<8xf32> to vector<8x1xf32>
    %54 = arith.addf %41, %53 : vector<8x1xf32>
    %cst_23 = arith.constant 9.99999997E-7 : f32
    %55 = vector.broadcast %cst_23 : f32 to vector<8x1xf32>
    %56 = arith.addf %54, %55 : vector<8x1xf32>
    %57 = math.log %56 : vector<8x1xf32>
    %cst_24 = arith.constant 2.000000e+00 : f32
    %58 = vector.broadcast %cst_24 : f32 to vector<8x1xf32>
    %59 = arith.mulf %58, %57 : vector<8x1xf32>
    %60 = arith.subf %48, %59 : vector<8x1xf32>
    %61 = arith.addf %26, %60 : vector<8x1xf32>
    %cst_25 = arith.constant 0.000000e+00 : f32
    %62 = vector.broadcast %cst_25 : f32 to vector<8x1xf32>
    %cst_26 = arith.constant 0.000000e+00 : f32
    %63 = vector.broadcast %cst_26 : f32 to vector<8x1xf32>
    %c2_27 = arith.constant 2 : index
    %c0_28 = arith.constant 0 : index
    %c0_29 = arith.constant 0 : index
    %64 = vector.load %arg1[%c2_27, %c0_28, %c0_29] : memref<3x8x128xf32, #tpu.memory_space<vmem>>, vector<1x8x128xf32>
    %65 = vector.shape_cast %64 : vector<1x8x128xf32> to vector<8x128xf32>
    %cst_30 = arith.constant dense<0.000000e+00> : vector<8x8xf32>
    %66 = tpu.matmul %14, %65, %cst_30 {dimension_numbers = #tpu.dot_dimension_numbers<[1], [1], [0], [0], [0, 0, 1, 0], [], []>} : vector<8x128xf32>, vector<8x128xf32>, vector<8x8xf32> -> vector<8x8xf32>
    %cst_31 = arith.constant dense<0xFF800000> : vector<8xf32>
    %67 = vector.multi_reduction <maximumf>, %66, %cst_31 [1] : vector<8x8xf32> to vector<8xf32>
    %68 = vector.shape_cast %67 : vector<8xf32> to vector<8x1xf32>
    %69 = arith.subf %25, %68 : vector<8x1xf32>
    %70 = arith.addf %62, %69 : vector<8x1xf32>
    %71 = vector.broadcast %68 : vector<8x1xf32> to vector<8x8xf32>
    %72 = arith.subf %66, %71 : vector<8x8xf32>
    %73 = math.exp %72 : vector<8x8xf32>
    %cst_32 = arith.constant dense<0.000000e+00> : vector<8xf32>
    %74 = vector.multi_reduction <add>, %73, %cst_32 [1] : vector<8x8xf32> to vector<8xf32>
    %75 = vector.shape_cast %74 : vector<8xf32> to vector<8x1xf32>
    %76 = arith.addf %63, %75 : vector<8x1xf32>
    %c0_33 = arith.constant 0 : index
    %c0_34 = arith.constant 0 : index
    %c0_35 = arith.constant 0 : index
    %77 = vector.load %arg1[%c0_33, %c0_34, %c0_35] : memref<3x8x128xf32, #tpu.memory_space<vmem>>, vector<1x8x128xf32>
    %78 = vector.shape_cast %77 : vector<1x8x128xf32> to vector<8x128xf32>
    %cst_36 = arith.constant dense<0.000000e+00> : vector<8x8xf32>
    %79 = tpu.matmul %14, %78, %cst_36 {dimension_numbers = #tpu.dot_dimension_numbers<[1], [1], [0], [0], [0, 0, 1, 0], [], []>} : vector<8x128xf32>, vector<8x128xf32>, vector<8x8xf32> -> vector<8x8xf32>
    %cst_37 = arith.constant dense<0xFF800000> : vector<8xf32>
    %80 = vector.multi_reduction <maximumf>, %79, %cst_37 [1] : vector<8x8xf32> to vector<8xf32>
    %81 = vector.shape_cast %80 : vector<8xf32> to vector<8x1xf32>
    %82 = arith.subf %19, %81 : vector<8x1xf32>
    %83 = arith.addf %70, %82 : vector<8x1xf32>
    %84 = vector.broadcast %81 : vector<8x1xf32> to vector<8x8xf32>
    %85 = arith.subf %79, %84 : vector<8x8xf32>
    %86 = math.exp %85 : vector<8x8xf32>
    %cst_38 = arith.constant dense<0.000000e+00> : vector<8xf32>
    %87 = vector.multi_reduction <add>, %86, %cst_38 [1] : vector<8x8xf32> to vector<8xf32>
    %88 = vector.shape_cast %87 : vector<8xf32> to vector<8x1xf32>
    %89 = arith.addf %76, %88 : vector<8x1xf32>
    %cst_39 = arith.constant 9.99999997E-7 : f32
    %90 = vector.broadcast %cst_39 : f32 to vector<8x1xf32>
    %91 = arith.addf %89, %90 : vector<8x1xf32>
    %92 = math.log %91 : vector<8x1xf32>
    %cst_40 = arith.constant 2.000000e+00 : f32
    %93 = vector.broadcast %cst_40 : f32 to vector<8x1xf32>
    %94 = arith.mulf %93, %92 : vector<8x1xf32>
    %95 = arith.subf %83, %94 : vector<8x1xf32>
    %96 = arith.addf %61, %95 : vector<8x1xf32>
    %cst_41 = arith.constant 0.000000e+00 : f32
    %97 = vector.broadcast %cst_41 : f32 to vector<8x1xf32>
    %cst_42 = arith.constant 0.000000e+00 : f32
    %98 = vector.broadcast %cst_42 : f32 to vector<8x1xf32>
    %c0_43 = arith.constant 0 : index
    %c0_44 = arith.constant 0 : index
    %c0_45 = arith.constant 0 : index
    %99 = vector.load %arg1[%c0_43, %c0_44, %c0_45] : memref<3x8x128xf32, #tpu.memory_space<vmem>>, vector<1x8x128xf32>
    %100 = vector.shape_cast %99 : vector<1x8x128xf32> to vector<8x128xf32>
    %cst_46 = arith.constant dense<0.000000e+00> : vector<8x8xf32>
    %101 = tpu.matmul %16, %100, %cst_46 {dimension_numbers = #tpu.dot_dimension_numbers<[1], [1], [0], [0], [0, 0, 1, 0], [], []>} : vector<8x128xf32>, vector<8x128xf32>, vector<8x8xf32> -> vector<8x8xf32>
    %cst_47 = arith.constant dense<0xFF800000> : vector<8xf32>
    %102 = vector.multi_reduction <maximumf>, %101, %cst_47 [1] : vector<8x8xf32> to vector<8xf32>
    %103 = vector.shape_cast %102 : vector<8xf32> to vector<8x1xf32>
    %104 = arith.subf %22, %103 : vector<8x1xf32>
    %105 = arith.addf %97, %104 : vector<8x1xf32>
    %106 = vector.broadcast %103 : vector<8x1xf32> to vector<8x8xf32>
    %107 = arith.subf %101, %106 : vector<8x8xf32>
    %108 = math.exp %107 : vector<8x8xf32>
    %cst_48 = arith.constant dense<0.000000e+00> : vector<8xf32>
    %109 = vector.multi_reduction <add>, %108, %cst_48 [1] : vector<8x8xf32> to vector<8xf32>
    %110 = vector.shape_cast %109 : vector<8xf32> to vector<8x1xf32>
    %111 = arith.addf %98, %110 : vector<8x1xf32>
    %c1_49 = arith.constant 1 : index
    %c0_50 = arith.constant 0 : index
    %c0_51 = arith.constant 0 : index
    %112 = vector.load %arg1[%c1_49, %c0_50, %c0_51] : memref<3x8x128xf32, #tpu.memory_space<vmem>>, vector<1x8x128xf32>
    %113 = vector.shape_cast %112 : vector<1x8x128xf32> to vector<8x128xf32>
    %cst_52 = arith.constant dense<0.000000e+00> : vector<8x8xf32>
    %114 = tpu.matmul %16, %113, %cst_52 {dimension_numbers = #tpu.dot_dimension_numbers<[1], [1], [0], [0], [0, 0, 1, 0], [], []>} : vector<8x128xf32>, vector<8x128xf32>, vector<8x8xf32> -> vector<8x8xf32>
    %cst_53 = arith.constant dense<0xFF800000> : vector<8xf32>
    %115 = vector.multi_reduction <maximumf>, %114, %cst_53 [1] : vector<8x8xf32> to vector<8xf32>
    %116 = vector.shape_cast %115 : vector<8xf32> to vector<8x1xf32>
    %117 = arith.subf %25, %116 : vector<8x1xf32>
    %118 = arith.addf %105, %117 : vector<8x1xf32>
    %119 = vector.broadcast %116 : vector<8x1xf32> to vector<8x8xf32>
    %120 = arith.subf %114, %119 : vector<8x8xf32>
    %121 = math.exp %120 : vector<8x8xf32>
    %cst_54 = arith.constant dense<0.000000e+00> : vector<8xf32>
    %122 = vector.multi_reduction <add>, %121, %cst_54 [1] : vector<8x8xf32> to vector<8xf32>
    %123 = vector.shape_cast %122 : vector<8xf32> to vector<8x1xf32>
    %124 = arith.addf %111, %123 : vector<8x1xf32>
    %cst_55 = arith.constant 9.99999997E-7 : f32
    %125 = vector.broadcast %cst_55 : f32 to vector<8x1xf32>
    %126 = arith.addf %124, %125 : vector<8x1xf32>
    %127 = math.log %126 : vector<8x1xf32>
    %cst_56 = arith.constant 2.000000e+00 : f32
    %128 = vector.broadcast %cst_56 : f32 to vector<8x1xf32>
    %129 = arith.mulf %128, %127 : vector<8x1xf32>
    %130 = arith.subf %118, %129 : vector<8x1xf32>
    %131 = arith.addf %96, %130 : vector<8x1xf32>
    %132 = vector.shape_cast %131 : vector<8x1xf32> to vector<1x8x1xf32>
    %cst_57 = arith.constant dense<0.000000e+00> : vector<1xf32>
    %133 = vector.multi_reduction <add>, %132, %cst_57 [1, 2] : vector<1x8x1xf32> to vector<1xf32>
    %134 = vector.shape_cast %133 : vector<1xf32> to vector<1x1x1xf32>
    %135 = vector.extract %134[0, 0, 0] : f32 from vector<1x1x1xf32>
    %136 = vector.broadcast %135 : f32 to vector<1x8x128xf32>
    %c0_58 = arith.constant 0 : index
    %c0_59 = arith.constant 0 : index
    %c0_60 = arith.constant 0 : index
    %137 = vector.load %arg2[%c0_58, %c0_59, %c0_60] : memref<1x8x128xf32, #tpu.memory_space<vmem>>, vector<1x8x128xf32>
    tpu.vector_store %arg2[%c0_58, %c0_59, %c0_60], %136 {strides = array<i32>} : memref<1x8x128xf32, #tpu.memory_space<vmem>>, vector<1x8x128xf32>,
    return
  }
  func.func @transform_0(%arg0: i32) -> (i32, i32, i32) {
    %c0_i32 = arith.constant 0 : i32
    %c0_i32_0 = arith.constant 0 : i32
    %c0_i32_1 = arith.constant 0 : i32
    %c0_i32_2 = arith.constant 0 : i32
    return %c0_i32, %c0_i32_0, %c0_i32_1 : i32, i32, i32
  }
  func.func @transform_1(%arg0: i32) -> (i32, i32, i32) {
    %c0_i32 = arith.constant 0 : i32
    %c0_i32_0 = arith.constant 0 : i32
    %c0_i32_1 = arith.constant 0 : i32
    return %arg0, %c0_i32, %c0_i32_0 : i32, i32, i32
  }
}

module attributes {stable_mosaic.version = 11 : i64} {
  func.func @_intra_con_loss_kernel(%arg0: i32, %arg1: memref<3x8x128xf32, #tpu.memory_space<vmem>>, %arg2: memref<1x8x128xf32, #tpu.memory_space<vmem>>) attributes {dimension_semantics = [#tpu.dimension_semantics<parallel>], iteration_bounds = array<i64: 1>, scalar_prefetch = 0 : i64, scratch_operands = 0 : i64, tpu.core_type = #tpu.core_type<tc>, window_params = [{pipeline_mode = #tpu.pipeline_mode<synchronous>, transform_indices = @transform_0, window_bounds = array<i64: 3, 8, 128>}, {transform_indices = @transform_1, window_bounds = array<i64: 1, 8, 128>}]} {
    %c8_i32 = arith.constant 8 : i32
    %0 = arith.muli %arg0, %c8_i32 : i32
    %1 = tpu.assume_multiple %0, 8 : i32
    %c0 = arith.constant 0 : index
    %2 = arith.index_cast %1 : i32 to index
    %c0_0 = arith.constant 0 : index
    %3 = vector.load %arg1[%c0, %2, %c0_0] : memref<3x8x128xf32, #tpu.memory_space<vmem>>, vector<1x8x128xf32>
    %4 = vector.shape_cast %3 : vector<1x8x128xf32> to vector<8x128xf32>
    %c1 = arith.constant 1 : index
    %5 = arith.index_cast %1 : i32 to index
    %c0_1 = arith.constant 0 : index
    %6 = vector.load %arg1[%c1, %5, %c0_1] : memref<3x8x128xf32, #tpu.memory_space<vmem>>, vector<1x8x128xf32>
    %7 = vector.shape_cast %6 : vector<1x8x128xf32> to vector<8x128xf32>
    %c2 = arith.constant 2 : index
    %8 = arith.index_cast %1 : i32 to index
    %c0_2 = arith.constant 0 : index
    %9 = vector.load %arg1[%c2, %8, %c0_2] : memref<3x8x128xf32, #tpu.memory_space<vmem>>, vector<1x8x128xf32>
    %10 = vector.shape_cast %9 : vector<1x8x128xf32> to vector<8x128xf32>
    %cst = arith.constant 14.2857141 : f32
    %11 = vector.broadcast %cst : f32 to vector<8x128xf32>
    %12 = arith.mulf %4, %11 : vector<8x128xf32>
    %cst_3 = arith.constant 14.2857141 : f32
    %13 = vector.broadcast %cst_3 : f32 to vector<8x128xf32>
    %14 = arith.mulf %7, %13 : vector<8x128xf32>
    %cst_4 = arith.constant 14.2857141 : f32
    %15 = vector.broadcast %cst_4 : f32 to vector<8x128xf32>
    %16 = arith.mulf %10, %15 : vector<8x128xf32>
    %17 = arith.mulf %12, %7 : vector<8x128xf32>
    %cst_5 = arith.constant dense<0.000000e+00> : vector<8xf32>
    %18 = vector.multi_reduction <add>, %17, %cst_5 [1] : vector<8x128xf32> to vector<8xf32>
    %19 = vector.shape_cast %18 : vector<8xf32> to vector<8x1xf32>
    %20 = arith.mulf %12, %10 : vector<8x128xf32>
    %cst_6 = arith.constant dense<0.000000e+00> : vector<8xf32>
    %21 = vector.multi_reduction <add>, %20, %cst_6 [1] : vector<8x128xf32> to vector<8xf32>
    %22 = vector.shape_cast %21 : vector<8xf32> to vector<8x1xf32>
    %23 = arith.mulf %14, %10 : vector<8x128xf32>
    %cst_7 = arith.constant dense<0.000000e+00> : vector<8xf32>
    %24 = vector.multi_reduction <add>, %23, %cst_7 [1] : vector<8x128xf32> to vector<8xf32>
    %25 = vector.shape_cast %24 : vector<8xf32> to vector<8x1xf32>
    %cst_8 = arith.constant 0.000000e+00 : f32
    %26 = vector.broadcast %cst_8 : f32 to vector<8x1xf32>
    %cst_9 = arith.constant 0.000000e+00 : f32
    %27 = vector.broadcast %cst_9 : f32 to vector<8x1xf32>
    %cst_10 = arith.constant 0.000000e+00 : f32
    %28 = vector.broadcast %cst_10 : f32 to vector<8x1xf32>
    %c1_11 = arith.constant 1 : index
    %c0_12 = arith.constant 0 : index
    %c0_13 = arith.constant 0 : index
    %29 = vector.load %arg1[%c1_11, %c0_12, %c0_13] : memref<3x8x128xf32, #tpu.memory_space<vmem>>, vector<1x8x128xf32>
    %30 = vector.shape_cast %29 : vector<1x8x128xf32> to vector<8x128xf32>
    %cst_14 = arith.constant dense<0.000000e+00> : vector<8x8xf32>
    %31 = tpu.matmul %12, %30, %cst_14 {dimension_numbers = #tpu.dot_dimension_numbers<[1], [1], [0], [0], [0, 0, 1, 0], [], []>} : vector<8x128xf32>, vector<8x128xf32>, vector<8x8xf32> -> vector<8x8xf32>
    %cst_15 = arith.constant dense<0xFF800000> : vector<8xf32>
    %32 = vector.multi_reduction <maximumf>, %31, %cst_15 [1] : vector<8x8xf32> to vector<8xf32>
    %33 = vector.shape_cast %32 : vector<8xf32> to vector<8x1xf32>
    %34 = arith.subf %19, %33 : vector<8x1xf32>
    %35 = arith.addf %27, %34 : vector<8x1xf32>
    %36 = vector.broadcast %33 : vector<8x1xf32> to vector<8x8xf32>
    %37 = arith.subf %31, %36 : vector<8x8xf32>
    %38 = math.exp %37 : vector<8x8xf32>
    %cst_16 = arith.constant dense<0.000000e+00> : vector<8xf32>
    %39 = vector.multi_reduction <add>, %38, %cst_16 [1] : vector<8x8xf32> to vector<8xf32>
    %40 = vector.shape_cast %39 : vector<8xf32> to vector<8x1xf32>
    %41 = arith.addf %28, %40 : vector<8x1xf32>
    %c2_17 = arith.constant 2 : index
    %c0_18 = arith.constant 0 : index
    %c0_19 = arith.constant 0 : index
    %42 = vector.load %arg1[%c2_17, %c0_18, %c0_19] : memref<3x8x128xf32, #tpu.memory_space<vmem>>, vector<1x8x128xf32>
    %43 = vector.shape_cast %42 : vector<1x8x128xf32> to vector<8x128xf32>
    %cst_20 = arith.constant dense<0.000000e+00> : vector<8x8xf32>
    %44 = tpu.matmul %12, %43, %cst_20 {dimension_numbers = #tpu.dot_dimension_numbers<[1], [1], [0], [0], [0, 0, 1, 0], [], []>} : vector<8x128xf32>, vector<8x128xf32>, vector<8x8xf32> -> vector<8x8xf32>
    %cst_21 = arith.constant dense<0xFF800000> : vector<8xf32>
    %45 = vector.multi_reduction <maximumf>, %44, %cst_21 [1] : vector<8x8xf32> to vector<8xf32>
    %46 = vector.shape_cast %45 : vector<8xf32> to vector<8x1xf32>
    %47 = arith.subf %22, %46 : vector<8x1xf32>
    %48 = arith.addf %35, %47 : vector<8x1xf32>
    %49 = vector.broadcast %46 : vector<8x1xf32> to vector<8x8xf32>
    %50 = arith.subf %44, %49 : vector<8x8xf32>
    %51 = math.exp %50 : vector<8x8xf32>
    %cst_22 = arith.constant dense<0.000000e+00> : vector<8xf32>
    %52 = vector.multi_reduction <add>, %51, %cst_22 [1] : vector<8x8xf32> to vector<8xf32>
    %53 = vector.shape_cast %52 : vector<8xf32> to vector<8x1xf32>
    %54 = arith.addf %41, %53 : vector<8x1xf32>
    %cst_23 = arith.constant 9.99999997E-7 : f32
    %55 = vector.broadcast %cst_23 : f32 to vector<8x1xf32>
    %56 = arith.addf %54, %55 : vector<8x1xf32>
    %57 = math.log %56 : vector<8x1xf32>
    %cst_24 = arith.constant 2.000000e+00 : f32
    %58 = vector.broadcast %cst_24 : f32 to vector<8x1xf32>
    %59 = arith.mulf %58, %57 : vector<8x1xf32>
    %60 = arith.subf %48, %59 : vector<8x1xf32>
    %61 = arith.addf %26, %60 : vector<8x1xf32>
    %cst_25 = arith.constant 0.000000e+00 : f32
    %62 = vector.broadcast %cst_25 : f32 to vector<8x1xf32>
    %cst_26 = arith.constant 0.000000e+00 : f32
    %63 = vector.broadcast %cst_26 : f32 to vector<8x1xf32>
    %c2_27 = arith.constant 2 : index
    %c0_28 = arith.constant 0 : index
    %c0_29 = arith.constant 0 : index
    %64 = vector.load %arg1[%c2_27, %c0_28, %c0_29] : memref<3x8x128xf32, #tpu.memory_space<vmem>>, vector<1x8x128xf32>
    %65 = vector.shape_cast %64 : vector<1x8x128xf32> to vector<8x128xf32>
    %cst_30 = arith.constant dense<0.000000e+00> : vector<8x8xf32>
    %66 = tpu.matmul %14, %65, %cst_30 {dimension_numbers = #tpu.dot_dimension_numbers<[1], [1], [0], [0], [0, 0, 1, 0], [], []>} : vector<8x128xf32>, vector<8x128xf32>, vector<8x8xf32> -> vector<8x8xf32>
    %cst_31 = arith.constant dense<0xFF800000> : vector<8xf32>
    %67 = vector.multi_reduction <maximumf>, %66, %cst_31 [1] : vector<8x8xf32> to vector<8xf32>
    %68 = vector.shape_cast %67 : vector<8xf32> to vector<8x1xf32>
    %69 = arith.subf %25, %68 : vector<8x1xf32>
    %70 = arith.addf %62, %69 : vector<8x1xf32>
    %71 = vector.broadcast %68 : vector<8x1xf32> to vector<8x8xf32>
    %72 = arith.subf %66, %71 : vector<8x8xf32>
    %73 = math.exp %72 : vector<8x8xf32>
    %cst_32 = arith.constant dense<0.000000e+00> : vector<8xf32>
    %74 = vector.multi_reduction <add>, %73, %cst_32 [1] : vector<8x8xf32> to vector<8xf32>
    %75 = vector.shape_cast %74 : vector<8xf32> to vector<8x1xf32>
    %76 = arith.addf %63, %75 : vector<8x1xf32>
    %c0_33 = arith.constant 0 : index
    %c0_34 = arith.constant 0 : index
    %c0_35 = arith.constant 0 : index
    %77 = vector.load %arg1[%c0_33, %c0_34, %c0_35] : memref<3x8x128xf32, #tpu.memory_space<vmem>>, vector<1x8x128xf32>
    %78 = vector.shape_cast %77 : vector<1x8x128xf32> to vector<8x128xf32>
    %cst_36 = arith.constant dense<0.000000e+00> : vector<8x8xf32>
    %79 = tpu.matmul %14, %78, %cst_36 {dimension_numbers = #tpu.dot_dimension_numbers<[1], [1], [0], [0], [0, 0, 1, 0], [], []>} : vector<8x128xf32>, vector<8x128xf32>, vector<8x8xf32> -> vector<8x8xf32>
    %cst_37 = arith.constant dense<0xFF800000> : vector<8xf32>
    %80 = vector.multi_reduction <maximumf>, %79, %cst_37 [1] : vector<8x8xf32> to vector<8xf32>
    %81 = vector.shape_cast %80 : vector<8xf32> to vector<8x1xf32>
    %82 = arith.subf %19, %81 : vector<8x1xf32>
    %83 = arith.addf %70, %82 : vector<8x1xf32>
    %84 = vector.broadcast %81 : vector<8x1xf32> to vector<8x8xf32>
    %85 = arith.subf %79, %84 : vector<8x8xf32>
    %86 = math.exp %85 : vector<8x8xf32>
    %cst_38 = arith.constant dense<0.000000e+00> : vector<8xf32>
    %87 = vector.multi_reduction <add>, %86, %cst_38 [1] : vector<8x8xf32> to vector<8xf32>
    %88 = vector.shape_cast %87 : vector<8xf32> to vector<8x1xf32>
    %89 = arith.addf %76, %88 : vector<8x1xf32>
    %cst_39 = arith.constant 9.99999997E-7 : f32
    %90 = vector.broadcast %cst_39 : f32 to vector<8x1xf32>
    %91 = arith.addf %89, %90 : vector<8x1xf32>
    %92 = math.log %91 : vector<8x1xf32>
    %cst_40 = arith.constant 2.000000e+00 : f32
    %93 = vector.broadcast %cst_40 : f32 to vector<8x1xf32>
    %94 = arith.mulf %93, %92 : vector<8x1xf32>
    %95 = arith.subf %83, %94 : vector<8x1xf32>
    %96 = arith.addf %61, %95 : vector<8x1xf32>
    %cst_41 = arith.constant 0.000000e+00 : f32
    %97 = vector.broadcast %cst_41 : f32 to vector<8x1xf32>
    %cst_42 = arith.constant 0.000000e+00 : f32
    %98 = vector.broadcast %cst_42 : f32 to vector<8x1xf32>
    %c0_43 = arith.constant 0 : index
    %c0_44 = arith.constant 0 : index
    %c0_45 = arith.constant 0 : index
    %99 = vector.load %arg1[%c0_43, %c0_44, %c0_45] : memref<3x8x128xf32, #tpu.memory_space<vmem>>, vector<1x8x128xf32>
    %100 = vector.shape_cast %99 : vector<1x8x128xf32> to vector<8x128xf32>
    %cst_46 = arith.constant dense<0.000000e+00> : vector<8x8xf32>
    %101 = tpu.matmul %16, %100, %cst_46 {dimension_numbers = #tpu.dot_dimension_numbers<[1], [1], [0], [0], [0, 0, 1, 0], [], []>} : vector<8x128xf32>, vector<8x128xf32>, vector<8x8xf32> -> vector<8x8xf32>
    %cst_47 = arith.constant dense<0xFF800000> : vector<8xf32>
    %102 = vector.multi_reduction <maximumf>, %101, %cst_47 [1] : vector<8x8xf32> to vector<8xf32>
    %103 = vector.shape_cast %102 : vector<8xf32> to vector<8x1xf32>
    %104 = arith.subf %22, %103 : vector<8x1xf32>
    %105 = arith.addf %97, %104 : vector<8x1xf32>
    %106 = vector.broadcast %103 : vector<8x1xf32> to vector<8x8xf32>
    %107 = arith.subf %101, %106 : vector<8x8xf32>
    %108 = math.exp %107 : vector<8x8xf32>
    %cst_48 = arith.constant dense<0.000000e+00> : vector<8xf32>
    %109 = vector.multi_reduction <add>, %108, %cst_48 [1] : vector<8x8xf32> to vector<8xf32>
    %110 = vector.shape_cast %109 : vector<8xf32> to vector<8x1xf32>
    %111 = arith.addf %98, %110 : vector<8x1xf32>
    %c1_49 = arith.constant 1 : index
    %c0_50 = arith.constant 0 : index
    %c0_51 = arith.constant 0 : index
    %112 = vector.load %arg1[%c1_49, %c0_50, %c0_51] : memref<3x8x128xf32, #tpu.memory_space<vmem>>, vector<1x8x128xf32>
    %113 = vector.shape_cast %112 : vector<1x8x128xf32> to vector<8x128xf32>
    %cst_52 = arith.constant dense<0.000000e+00> : vector<8x8xf32>
    %114 = tpu.matmul %16, %113, %cst_52 {dimension_numbers = #tpu.dot_dimension_numbers<[1], [1], [0], [0], [0, 0, 1, 0], [], []>} : vector<8x128xf32>, vector<8x128xf32>, vector<8x8xf32> -> vector<8x8xf32>
    %cst_53 = arith.constant dense<0xFF800000> : vector<8xf32>
    %115 = vector.multi_reduction <maximumf>, %114, %cst_53 [1] : vector<8x8xf32> to vector<8xf32>
    %116 = vector.shape_cast %115 : vector<8xf32> to vector<8x1xf32>
    %117 = arith.subf %25, %116 : vector<8x1xf32>
    %118 = arith.addf %105, %117 : vector<8x1xf32>
    %119 = vector.broadcast %116 : vector<8x1xf32> to vector<8x8xf32>
    %120 = arith.subf %114, %119 : vector<8x8xf32>
    %121 = math.exp %120 : vector<8x8xf32>
    %cst_54 = arith.constant dense<0.000000e+00> : vector<8xf32>
    %122 = vector.multi_reduction <add>, %121, %cst_54 [1] : vector<8x8xf32> to vector<8xf32>
    %123 = vector.shape_cast %122 : vector<8xf32> to vector<8x1xf32>
    %124 = arith.addf %111, %123 : vector<8x1xf32>
    %cst_55 = arith.constant 9.99999997E-7 : f32
    %125 = vector.broadcast %cst_55 : f32 to vector<8x1xf32>
    %126 = arith.addf %124, %125 : vector<8x1xf32>
    %127 = math.log %126 : vector<8x1xf32>
    %cst_56 = arith.constant 2.000000e+00 : f32
    %128 = vector.broadcast %cst_56 : f32 to vector<8x1xf32>
    %129 = arith.mulf %128, %127 : vector<8x1xf32>
    %130 = arith.subf %118, %129 : vector<8x1xf32>
    %131 = arith.addf %96, %130 : vector<8x1xf32>
    %132 = vector.shape_cast %131 : vector<8x1xf32> to vector<1x8x1xf32>
    %cst_57 = arith.constant dense<0.000000e+00> : vector<1xf32>
    %133 = vector.multi_reduction <add>, %132, %cst_57 [1, 2] : vector<1x8x1xf32> to vector<1xf32>
    %134 = vector.shape_cast %133 : vector<1xf32> to vector<1x1x1xf32>
    %135 = vector.extract %134[0, 0, 0] : f32 from vector<1x1x1xf32>
    %136 = vector.broadcast %135 : f32 to vector<1x8x128xf32>
    %c0_58 = arith.constant 0 : index
    %c0_59 = arith.constant 0 : index
    %c0_60 = arith.constant 0 : index
    %137 = vector.load %arg2[%c0_58, %c0_59, %c0_60] : memref<1x8x128xf32, #tpu.memory_space<vmem>>, vector<1x8x128xf32>
    tpu.vector_store %arg2[%c0_58, %c0_59, %c0_60], %136 {strides = array<i32>} : memref<1x8x128xf32, #tpu.memory_space<vmem>>, vector<1x8x128xf32>,
    return
  }
  func.func @transform_0(%arg0: i32) -> (i32, i32, i32) {
    %c0_i32 = arith.constant 0 : i32
    %c0_i32_0 = arith.constant 0 : i32
    %c0_i32_1 = arith.constant 0 : i32
    %c0_i32_2 = arith.constant 0 : i32
    return %c0_i32, %c0_i32_0, %c0_i32_1 : i32, i32, i32
  }
  func.func @transform_1(%arg0: i32) -> (i32, i32, i32) {
    %c0_i32 = arith.constant 0 : i32
    %c0_i32_0 = arith.constant 0 : i32
    %c0_i32_1 = arith.constant 0 : i32
    return %arg0, %c0_i32, %c0_i32_0 : i32, i32, i32
  }
}

</mosaic_0001>

<llo_original>
// kernel: tpu_custom_call.1
$region0: #{tpu_custom_call.1}
  #allocation0 [shape = 'u32[]', space=smem, size = 0x4, offset = 0x4, fixed_abs, tag = 'smem constant byte address 0x4 - core index']
  #allocation1 [shape = 'u32[144,128]{1,0:T(1,128)}', space=vmem, size = 0x12000, scoped, tag = 'internal scratch']
  %s0 = inlined_call_operand.hbm [shape: f32[3,8,128], index: 0, kind: input, shape index: {}]
  %s1 = inlined_call_operand.hbm [shape: f32[1,8,128], index: 1, kind: output, shape index: {}]
  %s2 = sld [smem:[#allocation0]]
  $region18: #{tpu_custom_call.1} parent=0
    _
  %s4 = ssub.s32 1, %s2
  %s5 = scalar_select 0, %s4, %s2
  $region1: #{tpu_custom_call.1} parent=0
    #allocation2 [shape = 'u8[12288]{0}', space=vmem, size = 0x3000, scoped, tag = 'input window, operand 0, single buffered']
    #allocation3 [shape = 's32[1]{0}', space=sflag, size = 0x4, scoped, tag = 'scoped memory for tpu_custom_call.1']
    #allocation4 [shape = 's32[1]{0}', space=sflag, size = 0x4, scoped, tag = 'scoped memory for tpu_custom_call.1']
    #allocation5 [shape = 'u8[4096]{0}', space=vmem, size = 0x1000, scoped, tag = 'output window, operand 0, single buffered']
    %6 = vsyncpa [#allocation3], 0
    %7 = vsyncpa [#allocation4], 0
    // Predicated region
    $region2: #{tpu_custom_call.1} parent=1 // pred_check
      _
    $region3: #{tpu_custom_call.1} parent=1 // pred_check_branch
      %9 = sbr.rel (0) target = $region5
    $region4: #{tpu_custom_call.1} parent=1 // pred_region
      %s11 = ssub.s32 384, 384
      %12 = vsyncadd [#allocation3], %s11
      %s13 = sshll.u32 [#allocation2], 4
      %s14 = int_to_ptr.vmem [resolvable:$true] %s13
      %19 = dma.hbm_to_vmem [thread:$0]  %s0, 384, %s14, [#allocation3], 128, 128, 8
    $region5: #{tpu_custom_call.1} parent=1 // pred_fallthru
      _
    // Predicated region
    $region6: #{tpu_custom_call.1} parent=1 // pred_check
      _
    $region7: #{tpu_custom_call.1} parent=1 // pred_check_branch
      %21 = sbr.rel (0) target = $region9
    $region8: #{tpu_custom_call.1} parent=1 // pred_region
      %22 = dma.done [#allocation3], 384
    $region9: #{tpu_custom_call.1} parent=1 // pred_fallthru
      _
    %s23 = smul.u32 0, 8
    %s24 = scalar_lea.vmem [#allocation2], %s23
    %v25 = vld [vmem:[%s24] sm:$0xff]
    %s26 = sadd.s32 %s23, 8
    %s27 = scalar_lea.vmem [#allocation2], %s26
    %v28 = vld [vmem:[%s27] sm:$0xff]
    %s29 = sadd.s32 %s23, 16
    %s30 = scalar_lea.vmem [#allocation2], %s29
    %v31 = vld [vmem:[%s30] sm:$0xff]
    %v32 = vmul.f32 %v25, 14.285714
    %v33 = vmul.f32 %v28, 14.285714
    %v34 = vmul.f32 %v31, 14.285714
    %v35 = vmul.f32 %v32, %v28
    %36 = vadd.xlane.f32.xlu0 %v35
    %v37 = vpop.xlane.xlu0 %36
    %v38 = vmul.f32 %v32, %v31
    %39 = vadd.xlane.f32.xlu0 %v38
    %v40 = vpop.xlane.xlu0 %39
    %v41 = vmul.f32 %v33, %v31
    %42 = vadd.xlane.f32.xlu0 %v41
    %v43 = vpop.xlane.xlu0 %42
    %s44 = scalar_lea.vmem [#allocation2], 8
    %v45 = vld [vmem:[%s44] sm:$0xff]
    %46 = vmatprep.subr.mxu0 0.0
    %47 = vmatpush1.xpose.msra.mxu0 %v45
    %48 = vmatprep.subr.mxu0 0.0
    %49 = vmatpush1.xpose.msra.mxu0 0.0
    %50 = vmatprep.subr.mxu0 0.0
    %51 = vmatpush1.xpose.msra.mxu0 0.0
    %52 = vmatprep.subr.mxu0 0.0
    %53 = vmatpush1.xpose.msra.mxu0 0.0
    %54 = vmatprep.subr.mxu0 0.0
    %55 = vmatpush1.xpose.msra.mxu0 0.0
    %56 = vmatprep.subr.mxu0 0.0
    %57 = vmatpush1.xpose.msra.mxu0 0.0
    %58 = vmatprep.subr.mxu0 0.0
    %59 = vmatpush1.xpose.msra.mxu0 0.0
    %60 = vmatprep.subr.mxu0 0.0
    %61 = vmatpush1.xpose.msra.mxu0 0.0
    %62 = vmatprep.subr.mxu0 0.0
    %63 = vmatpush1.xpose.msra.mxu0 0.0
    %64 = vmatprep.subr.mxu0 0.0
    %65 = vmatpush1.xpose.msra.mxu0 0.0
    %66 = vmatprep.subr.mxu0 0.0
    %67 = vmatpush1.xpose.msra.mxu0 0.0
    %68 = vmatprep.subr.mxu0 0.0
    %69 = vmatpush1.xpose.msra.mxu0 0.0
    %70 = vmatprep.subr.mxu0 0.0
    %71 = vmatpush1.xpose.msra.mxu0 0.0
    %72 = vmatprep.subr.mxu0 0.0
    %73 = vmatpush1.xpose.msra.mxu0 0.0
    %74 = vmatprep.subr.mxu0 0.0
    %75 = vmatpush1.xpose.msra.mxu0 0.0
    %76 = vmatprep.subr.mxu0 0.0
    %77 = vmatpush1.xpose.msra.mxu0 0.0
    %78 = vmatprep.subr.mxu0 0.0
    %79 = vmatpush1.xpose.msra.mxu0 0.0
    %80 = vmatprep.subr.mxu0 0.0
    %81 = vmatpush1.xpose.msra.mxu0 0.0
    %82 = vmatprep.subr.mxu0 0.0
    %83 = vmatpush1.xpose.msra.mxu0 0.0
    %84 = vmatprep.subr.mxu0 0.0
    %85 = vmatpush1.xpose.msra.mxu0 0.0
    %86 = vmatprep.subr.mxu0 0.0
    %87 = vmatpush1.xpose.msra.mxu0 0.0
    %88 = vmatprep.subr.mxu0 0.0
    %89 = vmatpush1.xpose.msra.mxu0 0.0
    %90 = vmatprep.subr.mxu0 0.0
    %91 = vmatpush1.xpose.msra.mxu0 0.0
    %92 = vmatprep.subr.mxu0 0.0
    %93 = vmatpush1.xpose.msra.mxu0 0.0
    %94 = vmatprep.subr.mxu0 0.0
    %95 = vmatpush1.xpose.msra.mxu0 0.0
    %96 = vmatprep.subr.mxu0 0.0
    %97 = vmatpush1.xpose.msra.mxu0 0.0
    %98 = vmatprep.subr.mxu0 0.0
    %99 = vmatpush1.xpose.msra.mxu0 0.0
    %100 = vmatprep.subr.mxu0 0.0
    %101 = vmatpush1.xpose.msra.mxu0 0.0
    %102 = vmatprep.subr.mxu0 0.0
    %103 = vmatpush1.xpose.msra.mxu0 0.0
    %104 = vmatprep.subr.mxu0 0.0
    %105 = vmatpush1.xpose.msra.mxu0 0.0
    %106 = vmatprep.subr.mxu0 0.0
    %107 = vmatpush1.xpose.msra.mxu0 0.0
    %108 = vmatprep.subr.mxu0 0.0
    %109 = vmatpush1.xpose.msra.mxu0 0.0
    %110 = vmatprep.mubr.f32.mxu0 0.0
    %111 = vmatmul.mubr.f32.gmra.mrb[0].mxu0 %v32
    %v112 = vpop.f32.mrb[0].mxu0
    %v113 = vadd.f32 0.0, %v112
    %v114 = vpop.f32.mrb[0].mxu0
    %115 = vdwg.mxu0
    %vm116 = vcmask 64512
    %v117 = vsel %vm116, %v113, -inf
    %118 = vmax.xlane.f32.xlu0 %v117
    %v119 = vpop.xlane.xlu0 %118
    %v120 = vsub.f32 %v37, %v119
    %v121 = vadd.f32 %v120, 0.0
    %v122 = vsub.f32 %v113, %v119
    %v123 = vmul.f32 %v122, 1.442695
    %v124 = vpow.pop %v123
    %v125 = vsel %vm116, %v124, 0.0
    %126 = vadd.xlane.f32.xlu0 %v125
    %v127 = vpop.xlane.xlu0 %126
    %v128 = vadd.f32 %v127, 0.0
    %s129 = scalar_lea.vmem [#allocation2], 16
    %v130 = vld [vmem:[%s129] sm:$0xff]
    %131 = vmatprep.subr.mxu0 0.0
    %132 = vmatpush1.xpose.msra.mxu0 %v130
    %133 = vmatprep.subr.mxu0 0.0
    %134 = vmatpush1.xpose.msra.mxu0 0.0
    %135 = vmatprep.subr.mxu0 0.0
    %136 = vmatpush1.xpose.msra.mxu0 0.0
    %137 = vmatprep.subr.mxu0 0.0
    %138 = vmatpush1.xpose.msra.mxu0 0.0
    %139 = vmatprep.subr.mxu0 0.0
    %140 = vmatpush1.xpose.msra.mxu0 0.0
    %141 = vmatprep.subr.mxu0 0.0
    %142 = vmatpush1.xpose.msra.mxu0 0.0
    %143 = vmatprep.subr.mxu0 0.0
    %144 = vmatpush1.xpose.msra.mxu0 0.0
    %145 = vmatprep.subr.mxu0 0.0
    %146 = vmatpush1.xpose.msra.mxu0 0.0
    %147 = vmatprep.subr.mxu0 0.0
    %148 = vmatpush1.xpose.msra.mxu0 0.0
    %149 = vmatprep.subr.mxu0 0.0
    %150 = vmatpush1.xpose.msra.mxu0 0.0
    %151 = vmatprep.subr.mxu0 0.0
    %152 = vmatpush1.xpose.msra.mxu0 0.0
    %153 = vmatprep.subr.mxu0 0.0
    %154 = vmatpush1.xpose.msra.mxu0 0.0
    %155 = vmatprep.subr.mxu0 0.0
    %156 = vmatpush1.xpose.msra.mxu0 0.0
    %157 = vmatprep.subr.mxu0 0.0
    %158 = vmatpush1.xpose.msra.mxu0 0.0
    %159 = vmatprep.subr.mxu0 0.0
    %160 = vmatpush1.xpose.msra.mxu0 0.0
    %161 = vmatprep.subr.mxu0 0.0
    %162 = vmatpush1.xpose.msra.mxu0 0.0
    %163 = vmatprep.subr.mxu0 0.0
    %164 = vmatpush1.xpose.msra.mxu0 0.0
    %165 = vmatprep.subr.mxu0 0.0
    %166 = vmatpush1.xpose.msra.mxu0 0.0
    %167 = vmatprep.subr.mxu0 0.0
    %168 = vmatpush1.xpose.msra.mxu0 0.0
    %169 = vmatprep.subr.mxu0 0.0
    %170 = vmatpush1.xpose.msra.mxu0 0.0
    %171 = vmatprep.subr.mxu0 0.0
    %172 = vmatpush1.xpose.msra.mxu0 0.0
    %173 = vmatprep.subr.mxu0 0.0
    %174 = vmatpush1.xpose.msra.mxu0 0.0
    %175 = vmatprep.subr.mxu0 0.0
    %176 = vmatpush1.xpose.msra.mxu0 0.0
    %177 = vmatprep.subr.mxu0 0.0
    %178 = vmatpush1.xpose.msra.mxu0 0.0
    %179 = vmatprep.subr.mxu0 0.0
    %180 = vmatpush1.xpose.msra.mxu0 0.0
    %181 = vmatprep.subr.mxu0 0.0
    %182 = vmatpush1.xpose.msra.mxu0 0.0
    %183 = vmatprep.subr.mxu0 0.0
    %184 = vmatpush1.xpose.msra.mxu0 0.0
    %185 = vmatprep.subr.mxu0 0.0
    %186 = vmatpush1.xpose.msra.mxu0 0.0
    %187 = vmatprep.subr.mxu0 0.0
    %188 = vmatpush1.xpose.msra.mxu0 0.0
    %189 = vmatprep.subr.mxu0 0.0
    %190 = vmatpush1.xpose.msra.mxu0 0.0
    %191 = vmatprep.subr.mxu0 0.0
    %192 = vmatpush1.xpose.msra.mxu0 0.0
    %193 = vmatprep.subr.mxu0 0.0
    %194 = vmatpush1.xpose.msra.mxu0 0.0
    %195 = vmatprep.mubr.f32.mxu0 0.0
    %196 = vmatmul.mubr.f32.gmra.mrb[0].mxu0 %v32
    %v197 = vpop.f32.mrb[0].mxu0
    %v198 = vadd.f32 0.0, %v197
    %v199 = vpop.f32.mrb[0].mxu0
    %200 = vdwg.mxu0
    %v201 = vsel %vm116, %v198, -inf
    %202 = vmax.xlane.f32.xlu0 %v201
    %v203 = vpop.xlane.xlu0 %202
    %v204 = vsub.f32 %v40, %v203
    %v205 = vadd.f32 %v121, %v204
    %v206 = vsub.f32 %v198, %v203
    %v207 = vmul.f32 %v206, 1.442695
    %v208 = vpow.pop %v207
    %v209 = vsel %vm116, %v208, 0.0
    %210 = vadd.xlane.f32.xlu0 %v209
    %v211 = vpop.xlane.xlu0 %210
    %v212 = vadd.f32 %v128, %v211
    %v213 = vadd.f32 %v212, 1e-06
    %v214 = vlog2.pop %v213
    %v215 = vmul.f32 %v214, 0.6931472
    %v216 = vmul.f32 %v215, 2.0
    %v217 = vsub.f32 %v205, %v216
    %v218 = vadd.f32 %v217, 0.0
    %219 = vmatprep.subr.mxu0 0.0
    %220 = vmatpush1.xpose.msra.mxu0 %v130
    %221 = vmatprep.subr.mxu0 0.0
    %222 = vmatpush1.xpose.msra.mxu0 0.0
    %223 = vmatprep.subr.mxu0 0.0
    %224 = vmatpush1.xpose.msra.mxu0 0.0
    %225 = vmatprep.subr.mxu0 0.0
    %226 = vmatpush1.xpose.msra.mxu0 0.0
    %227 = vmatprep.subr.mxu0 0.0
    %228 = vmatpush1.xpose.msra.mxu0 0.0
    %229 = vmatprep.subr.mxu0 0.0
    %230 = vmatpush1.xpose.msra.mxu0 0.0
    %231 = vmatprep.subr.mxu0 0.0
    %232 = vmatpush1.xpose.msra.mxu0 0.0
    %233 = vmatprep.subr.mxu0 0.0
    %234 = vmatpush1.xpose.msra.mxu0 0.0
    %235 = vmatprep.subr.mxu0 0.0
    %236 = vmatpush1.xpose.msra.mxu0 0.0
    %237 = vmatprep.subr.mxu0 0.0
    %238 = vmatpush1.xpose.msra.mxu0 0.0
    %239 = vmatprep.subr.mxu0 0.0
    %240 = vmatpush1.xpose.msra.mxu0 0.0
    %241 = vmatprep.subr.mxu0 0.0
    %242 = vmatpush1.xpose.msra.mxu0 0.0
    %243 = vmatprep.subr.mxu0 0.0
    %244 = vmatpush1.xpose.msra.mxu0 0.0
    %245 = vmatprep.subr.mxu0 0.0
    %246 = vmatpush1.xpose.msra.mxu0 0.0
    %247 = vmatprep.subr.mxu0 0.0
    %248 = vmatpush1.xpose.msra.mxu0 0.0
    %249 = vmatprep.subr.mxu0 0.0
    %250 = vmatpush1.xpose.msra.mxu0 0.0
    %251 = vmatprep.subr.mxu0 0.0
    %252 = vmatpush1.xpose.msra.mxu0 0.0
    %253 = vmatprep.subr.mxu0 0.0
    %254 = vmatpush1.xpose.msra.mxu0 0.0
    %255 = vmatprep.subr.mxu0 0.0
    %256 = vmatpush1.xpose.msra.mxu0 0.0
    %257 = vmatprep.subr.mxu0 0.0
    %258 = vmatpush1.xpose.msra.mxu0 0.0
    %259 = vmatprep.subr.mxu0 0.0
    %260 = vmatpush1.xpose.msra.mxu0 0.0
    %261 = vmatprep.subr.mxu0 0.0
    %262 = vmatpush1.xpose.msra.mxu0 0.0
    %263 = vmatprep.subr.mxu0 0.0
    %264 = vmatpush1.xpose.msra.mxu0 0.0
    %265 = vmatprep.subr.mxu0 0.0
    %266 = vmatpush1.xpose.msra.mxu0 0.0
    %267 = vmatprep.subr.mxu0 0.0
    %268 = vmatpush1.xpose.msra.mxu0 0.0
    %269 = vmatprep.subr.mxu0 0.0
    %270 = vmatpush1.xpose.msra.mxu0 0.0
    %271 = vmatprep.subr.mxu0 0.0
    %272 = vmatpush1.xpose.msra.mxu0 0.0
    %273 = vmatprep.subr.mxu0 0.0
    %274 = vmatpush1.xpose.msra.mxu0 0.0
    %275 = vmatprep.subr.mxu0 0.0
    %276 = vmatpush1.xpose.msra.mxu0 0.0
    %277 = vmatprep.subr.mxu0 0.0
    %278 = vmatpush1.xpose.msra.mxu0 0.0
    %279 = vmatprep.subr.mxu0 0.0
    %280 = vmatpush1.xpose.msra.mxu0 0.0
    %281 = vmatprep.subr.mxu0 0.0
    %282 = vmatpush1.xpose.msra.mxu0 0.0
    %283 = vmatprep.mubr.f32.mxu0 0.0
    %284 = vmatmul.mubr.f32.gmra.mrb[0].mxu0 %v33
    %v285 = vpop.f32.mrb[0].mxu0
    %v286 = vadd.f32 0.0, %v285
    %v287 = vpop.f32.mrb[0].mxu0
    %288 = vdwg.mxu0
    %v289 = vsel %vm116, %v286, -inf
    %290 = vmax.xlane.f32.xlu0 %v289
    %v291 = vpop.xlane.xlu0 %290
    %v292 = vsub.f32 %v43, %v291
    %v293 = vadd.f32 %v292, 0.0
    %v294 = vsub.f32 %v286, %v291
    %v295 = vmul.f32 %v294, 1.442695
    %v296 = vpow.pop %v295
    %v297 = vsel %vm116, %v296, 0.0
    %298 = vadd.xlane.f32.xlu0 %v297
    %v299 = vpop.xlane.xlu0 %298
    %v300 = vadd.f32 %v299, 0.0
    %v301 = vld [vmem:[#allocation2] sm:$0xff]
    %302 = vmatprep.subr.mxu0 0.0
    %303 = vmatpush1.xpose.msra.mxu0 %v301
    %304 = vmatprep.subr.mxu0 0.0
    %305 = vmatpush1.xpose.msra.mxu0 0.0
    %306 = vmatprep.subr.mxu0 0.0
    %307 = vmatpush1.xpose.msra.mxu0 0.0
    %308 = vmatprep.subr.mxu0 0.0
    %309 = vmatpush1.xpose.msra.mxu0 0.0
    %310 = vmatprep.subr.mxu0 0.0
    %311 = vmatpush1.xpose.msra.mxu0 0.0
    %312 = vmatprep.subr.mxu0 0.0
    %313 = vmatpush1.xpose.msra.mxu0 0.0
    %314 = vmatprep.subr.mxu0 0.0
    %315 = vmatpush1.xpose.msra.mxu0 0.0
    %316 = vmatprep.subr.mxu0 0.0
    %317 = vmatpush1.xpose.msra.mxu0 0.0
    %318 = vmatprep.subr.mxu0 0.0
    %319 = vmatpush1.xpose.msra.mxu0 0.0
    %320 = vmatprep.subr.mxu0 0.0
    %321 = vmatpush1.xpose.msra.mxu0 0.0
    %322 = vmatprep.subr.mxu0 0.0
    %323 = vmatpush1.xpose.msra.mxu0 0.0
    %324 = vmatprep.subr.mxu0 0.0
    %325 = vmatpush1.xpose.msra.mxu0 0.0
    %326 = vmatprep.subr.mxu0 0.0
    %327 = vmatpush1.xpose.msra.mxu0 0.0
    %328 = vmatprep.subr.mxu0 0.0
    %329 = vmatpush1.xpose.msra.mxu0 0.0
    %330 = vmatprep.subr.mxu0 0.0
    %331 = vmatpush1.xpose.msra.mxu0 0.0
    %332 = vmatprep.subr.mxu0 0.0
    %333 = vmatpush1.xpose.msra.mxu0 0.0
    %334 = vmatprep.subr.mxu0 0.0
    %335 = vmatpush1.xpose.msra.mxu0 0.0
    %336 = vmatprep.subr.mxu0 0.0
    %337 = vmatpush1.xpose.msra.mxu0 0.0
    %338 = vmatprep.subr.mxu0 0.0
    %339 = vmatpush1.xpose.msra.mxu0 0.0
    %340 = vmatprep.subr.mxu0 0.0
    %341 = vmatpush1.xpose.msra.mxu0 0.0
    %342 = vmatprep.subr.mxu0 0.0
    %343 = vmatpush1.xpose.msra.mxu0 0.0
    %344 = vmatprep.subr.mxu0 0.0
    %345 = vmatpush1.xpose.msra.mxu0 0.0
    %346 = vmatprep.subr.mxu0 0.0
    %347 = vmatpush1.xpose.msra.mxu0 0.0
    %348 = vmatprep.subr.mxu0 0.0
    %349 = vmatpush1.xpose.msra.mxu0 0.0
    %350 = vmatprep.subr.mxu0 0.0
    %351 = vmatpush1.xpose.msra.mxu0 0.0
    %352 = vmatprep.subr.mxu0 0.0
    %353 = vmatpush1.xpose.msra.mxu0 0.0
    %354 = vmatprep.subr.mxu0 0.0
    %355 = vmatpush1.xpose.msra.mxu0 0.0
    %356 = vmatprep.subr.mxu0 0.0
    %357 = vmatpush1.xpose.msra.mxu0 0.0
    %358 = vmatprep.subr.mxu0 0.0
    %359 = vmatpush1.xpose.msra.mxu0 0.0
    %360 = vmatprep.subr.mxu0 0.0
    %361 = vmatpush1.xpose.msra.mxu0 0.0
    %362 = vmatprep.subr.mxu0 0.0
    %363 = vmatpush1.xpose.msra.mxu0 0.0
    %364 = vmatprep.subr.mxu0 0.0
    %365 = vmatpush1.xpose.msra.mxu0 0.0
    %366 = vmatprep.mubr.f32.mxu0 0.0
    %367 = vmatmul.mubr.f32.gmra.mrb[0].mxu0 %v33
    %v368 = vpop.f32.mrb[0].mxu0
    %v369 = vadd.f32 0.0, %v368
    %v370 = vpop.f32.mrb[0].mxu0
    %371 = vdwg.mxu0
    %v372 = vsel %vm116, %v369, -inf
    %373 = vmax.xlane.f32.xlu0 %v372
    %v374 = vpop.xlane.xlu0 %373
    %v375 = vsub.f32 %v37, %v374
    %v376 = vadd.f32 %v293, %v375
    %v377 = vsub.f32 %v369, %v374
    %v378 = vmul.f32 %v377, 1.442695
    %v379 = vpow.pop %v378
    %v380 = vsel %vm116, %v379, 0.0
    %381 = vadd.xlane.f32.xlu0 %v380
    %v382 = vpop.xlane.xlu0 %381
    %v383 = vadd.f32 %v300, %v382
    %v384 = vadd.f32 %v383, 1e-06
    %v385 = vlog2.pop %v384
    %v386 = vmul.f32 %v385, 0.6931472
    %v387 = vmul.f32 %v386, 2.0
    %v388 = vsub.f32 %v376, %v387
    %v389 = vadd.f32 %v218, %v388
    %390 = vmatprep.subr.mxu0 0.0
    %391 = vmatpush1.xpose.msra.mxu0 %v301
    %392 = vmatprep.subr.mxu0 0.0
    %393 = vmatpush1.xpose.msra.mxu0 0.0
    %394 = vmatprep.subr.mxu0 0.0
    %395 = vmatpush1.xpose.msra.mxu0 0.0
    %396 = vmatprep.subr.mxu0 0.0
    %397 = vmatpush1.xpose.msra.mxu0 0.0
    %398 = vmatprep.subr.mxu0 0.0
    %399 = vmatpush1.xpose.msra.mxu0 0.0
    %400 = vmatprep.subr.mxu0 0.0
    %401 = vmatpush1.xpose.msra.mxu0 0.0
    %402 = vmatprep.subr.mxu0 0.0
    %403 = vmatpush1.xpose.msra.mxu0 0.0
    %404 = vmatprep.subr.mxu0 0.0
    %405 = vmatpush1.xpose.msra.mxu0 0.0
    %406 = vmatprep.subr.mxu0 0.0
    %407 = vmatpush1.xpose.msra.mxu0 0.0
    %408 = vmatprep.subr.mxu0 0.0
    %409 = vmatpush1.xpose.msra.mxu0 0.0
    %410 = vmatprep.subr.mxu0 0.0
    %411 = vmatpush1.xpose.msra.mxu0 0.0
    %412 = vmatprep.subr.mxu0 0.0
    %413 = vmatpush1.xpose.msra.mxu0 0.0
    %414 = vmatprep.subr.mxu0 0.0
    %415 = vmatpush1.xpose.msra.mxu0 0.0
    %416 = vmatprep.subr.mxu0 0.0
    %417 = vmatpush1.xpose.msra.mxu0 0.0
    %418 = vmatprep.subr.mxu0 0.0
    %419 = vmatpush1.xpose.msra.mxu0 0.0
    %420 = vmatprep.subr.mxu0 0.0
    %421 = vmatpush1.xpose.msra.mxu0 0.0
    %422 = vmatprep.subr.mxu0 0.0
    %423 = vmatpush1.xpose.msra.mxu0 0.0
    %424 = vmatprep.subr.mxu0 0.0
    %425 = vmatpush1.xpose.msra.mxu0 0.0
    %426 = vmatprep.subr.mxu0 0.0
    %427 = vmatpush1.xpose.msra.mxu0 0.0
    %428 = vmatprep.subr.mxu0 0.0
    %429 = vmatpush1.xpose.msra.mxu0 0.0
    %430 = vmatprep.subr.mxu0 0.0
    %431 = vmatpush1.xpose.msra.mxu0 0.0
    %432 = vmatprep.subr.mxu0 0.0
    %433 = vmatpush1.xpose.msra.mxu0 0.0
    %434 = vmatprep.subr.mxu0 0.0
    %435 = vmatpush1.xpose.msra.mxu0 0.0
    %436 = vmatprep.subr.mxu0 0.0
    %437 = vmatpush1.xpose.msra.mxu0 0.0
    %438 = vmatprep.subr.mxu0 0.0
    %439 = vmatpush1.xpose.msra.mxu0 0.0
    %440 = vmatprep.subr.mxu0 0.0
    %441 = vmatpush1.xpose.msra.mxu0 0.0
    %442 = vmatprep.subr.mxu0 0.0
    %443 = vmatpush1.xpose.msra.mxu0 0.0
    %444 = vmatprep.subr.mxu0 0.0
    %445 = vmatpush1.xpose.msra.mxu0 0.0
    %446 = vmatprep.subr.mxu0 0.0
    %447 = vmatpush1.xpose.msra.mxu0 0.0
    %448 = vmatprep.subr.mxu0 0.0
    %449 = vmatpush1.xpose.msra.mxu0 0.0
    %450 = vmatprep.subr.mxu0 0.0
    %451 = vmatpush1.xpose.msra.mxu0 0.0
    %452 = vmatprep.subr.mxu0 0.0
    %453 = vmatpush1.xpose.msra.mxu0 0.0
    %454 = vmatprep.mubr.f32.mxu0 0.0
    %455 = vmatmul.mubr.f32.gmra.mrb[0].mxu0 %v34
    %v456 = vpop.f32.mrb[0].mxu0
    %v457 = vadd.f32 0.0, %v456
    %v458 = vpop.f32.mrb[0].mxu0
    %459 = vdwg.mxu0
    %v460 = vsel %vm116, %v457, -inf
    %461 = vmax.xlane.f32.xlu0 %v460
    %v462 = vpop.xlane.xlu0 %461
    %v463 = vsub.f32 %v40, %v462
    %v464 = vadd.f32 %v463, 0.0
    %v465 = vsub.f32 %v457, %v462
    %v466 = vmul.f32 %v465, 1.442695
    %v467 = vpow.pop %v466
    %v468 = vsel %vm116, %v467, 0.0
    %469 = vadd.xlane.f32.xlu0 %v468
    %v470 = vpop.xlane.xlu0 %469
    %v471 = vadd.f32 %v470, 0.0
    %472 = vmatprep.subr.mxu0 0.0
    %473 = vmatpush1.xpose.msra.mxu0 %v45
    %474 = vmatprep.subr.mxu0 0.0
    %475 = vmatpush1.xpose.msra.mxu0 0.0
    %476 = vmatprep.subr.mxu0 0.0
    %477 = vmatpush1.xpose.msra.mxu0 0.0
    %478 = vmatprep.subr.mxu0 0.0
    %479 = vmatpush1.xpose.msra.mxu0 0.0
    %480 = vmatprep.subr.mxu0 0.0
    %481 = vmatpush1.xpose.msra.mxu0 0.0
    %482 = vmatprep.subr.mxu0 0.0
    %483 = vmatpush1.xpose.msra.mxu0 0.0
    %484 = vmatprep.subr.mxu0 0.0
    %485 = vmatpush1.xpose.msra.mxu0 0.0
    %486 = vmatprep.subr.mxu0 0.0
    %487 = vmatpush1.xpose.msra.mxu0 0.0
    %488 = vmatprep.subr.mxu0 0.0
    %489 = vmatpush1.xpose.msra.mxu0 0.0
    %490 = vmatprep.subr.mxu0 0.0
    %491 = vmatpush1.xpose.msra.mxu0 0.0
    %492 = vmatprep.subr.mxu0 0.0
    %493 = vmatpush1.xpose.msra.mxu0 0.0
    %494 = vmatprep.subr.mxu0 0.0
    %495 = vmatpush1.xpose.msra.mxu0 0.0
    %496 = vmatprep.subr.mxu0 0.0
    %497 = vmatpush1.xpose.msra.mxu0 0.0
    %498 = vmatprep.subr.mxu0 0.0
    %499 = vmatpush1.xpose.msra.mxu0 0.0
    %500 = vmatprep.subr.mxu0 0.0
    %501 = vmatpush1.xpose.msra.mxu0 0.0
    %502 = vmatprep.subr.mxu0 0.0
    %503 = vmatpush1.xpose.msra.mxu0 0.0
    %504 = vmatprep.subr.mxu0 0.0
    %505 = vmatpush1.xpose.msra.mxu0 0.0
    %506 = vmatprep.subr.mxu0 0.0
    %507 = vmatpush1.xpose.msra.mxu0 0.0
    %508 = vmatprep.subr.mxu0 0.0
    %509 = vmatpush1.xpose.msra.mxu0 0.0
    %510 = vmatprep.subr.mxu0 0.0
    %511 = vmatpush1.xpose.msra.mxu0 0.0
    %512 = vmatprep.subr.mxu0 0.0
    %513 = vmatpush1.xpose.msra.mxu0 0.0
    %514 = vmatprep.subr.mxu0 0.0
    %515 = vmatpush1.xpose.msra.mxu0 0.0
    %516 = vmatprep.subr.mxu0 0.0
    %517 = vmatpush1.xpose.msra.mxu0 0.0
    %518 = vmatprep.subr.mxu0 0.0
    %519 = vmatpush1.xpose.msra.mxu0 0.0
    %520 = vmatprep.subr.mxu0 0.0
    %521 = vmatpush1.xpose.msra.mxu0 0.0
    %522 = vmatprep.subr.mxu0 0.0
    %523 = vmatpush1.xpose.msra.mxu0 0.0
    %524 = vmatprep.subr.mxu0 0.0
    %525 = vmatpush1.xpose.msra.mxu0 0.0
    %526 = vmatprep.subr.mxu0 0.0
    %527 = vmatpush1.xpose.msra.mxu0 0.0
    %528 = vmatprep.subr.mxu0 0.0
    %529 = vmatpush1.xpose.msra.mxu0 0.0
    %530 = vmatprep.subr.mxu0 0.0
    %531 = vmatpush1.xpose.msra.mxu0 0.0
    %532 = vmatprep.subr.mxu0 0.0
    %533 = vmatpush1.xpose.msra.mxu0 0.0
    %534 = vmatprep.subr.mxu0 0.0
    %535 = vmatpush1.xpose.msra.mxu0 0.0
    %536 = vmatprep.mubr.f32.mxu0 0.0
    %537 = vmatmul.mubr.f32.gmra.mrb[0].mxu0 %v34
    %v538 = vpop.f32.mrb[0].mxu0
    %v539 = vadd.f32 0.0, %v538
    %v540 = vpop.f32.mrb[0].mxu0
    %541 = vdwg.mxu0
    %v542 = vsel %vm116, %v539, -inf
    %543 = vmax.xlane.f32.xlu0 %v542
    %v544 = vpop.xlane.xlu0 %543
    %v545 = vsub.f32 %v43, %v544
    %v546 = vadd.f32 %v464, %v545
    %v547 = vsub.f32 %v539, %v544
    %v548 = vmul.f32 %v547, 1.442695
    %v549 = vpow.pop %v548
    %v550 = vsel %vm116, %v549, 0.0
    %551 = vadd.xlane.f32.xlu0 %v550
    %v552 = vpop.xlane.xlu0 %551
    %v553 = vadd.f32 %v471, %v552
    %v554 = vadd.f32 %v553, 1e-06
    %v555 = vlog2.pop %v554
    %v556 = vmul.f32 %v555, 0.6931472
    %v557 = vmul.f32 %v556, 2.0
    %v558 = vsub.f32 %v546, %v557
    %v559 = vadd.f32 %v389, %v558
    %vm560 = vcmask 7168
    %v561 = vsel %vm560, %v559, 0.0
    %562 = vadd.xlane.f32.xlu0 %v561
    %v563 = vpop.xlane.xlu0 %562
    %v564 = vrot.slane %v563, 4
    %v565 = vadd.f32 %v563, %v564
    %v566 = vrot.slane %v565, 2
    %v567 = vadd.f32 %v565, %v566
    %v568 = vrot.slane %v567, 1
    %v569 = vadd.f32 %v567, %v568
    %s570 = vtos %v569
    %v571 = vstv %s570
    %572 = vst [vmem:[#allocation5] sm:$0xff] %v571
    // Predicated region
    $region10: #{tpu_custom_call.1} parent=1 // pred_check
      _
    $region11: #{tpu_custom_call.1} parent=1 // pred_check_branch
      %574 = sbr.rel (0) target = $region13
    $region12: #{tpu_custom_call.1} parent=1 // pred_region
      %s576 = ssub.s32 128, 128
      %577 = vsyncadd [#allocation4], %s576
      %s579 = sshll.u32 [#allocation5], 4
      %s580 = int_to_ptr.vmem [resolvable:$true] %s579
      %582 = dma.vmem_to_hbm [thread:$0]  %s580, 128, %s1, [#allocation4]
    $region13: #{tpu_custom_call.1} parent=1 // pred_fallthru
      _
    // Predicated region
    $region14: #{tpu_custom_call.1} parent=1 // pred_check
      _
    $region15: #{tpu_custom_call.1} parent=1 // pred_check_branch
      %584 = sbr.rel (0) target = $region17
    $region16: #{tpu_custom_call.1} parent=1 // pred_region
      %585 = dma.done [#allocation4], 128
    $region17: #{tpu_custom_call.1} parent=1 // pred_fallthru
      _
    %586 = vsyncpa [#allocation3], 1
    %587 = vsyncpa [#allocation4], 1

// kernel: tpu_custom_call.1
$region0: #{tpu_custom_call.1}
  #allocation0 [shape = 'u32[]', space=smem, size = 0x4, offset = 0x4, fixed_abs, tag = 'smem constant byte address 0x4 - core index']
  #allocation1 [shape = 'u32[144,128]{1,0:T(1,128)}', space=vmem, size = 0x12000, scoped, tag = 'internal scratch']
  %s0 = inlined_call_operand.hbm [shape: f32[3,8,128], index: 0, kind: input, shape index: {}]
  %s1 = inlined_call_operand.hbm [shape: f32[1,8,128], index: 1, kind: output, shape index: {}]
  %s2 = sld [smem:[#allocation0]]
  $region18: #{tpu_custom_call.1} parent=0
    _
  %s4 = ssub.s32 1, %s2
  %s5 = scalar_select 0, %s4, %s2
  $region1: #{tpu_custom_call.1} parent=0
    #allocation2 [shape = 'u8[12288]{0}', space=vmem, size = 0x3000, scoped, tag = 'input window, operand 0, single buffered']
    #allocation3 [shape = 's32[1]{0}', space=sflag, size = 0x4, scoped, tag = 'scoped memory for tpu_custom_call.1']
    #allocation4 [shape = 's32[1]{0}', space=sflag, size = 0x4, scoped, tag = 'scoped memory for tpu_custom_call.1']
    #allocation5 [shape = 'u8[4096]{0}', space=vmem, size = 0x1000, scoped, tag = 'output window, operand 0, single buffered']
    %6 = vsyncpa [#allocation3], 0
    %7 = vsyncpa [#allocation4], 0
    // Predicated region
    $region2: #{tpu_custom_call.1} parent=1 // pred_check
      _
    $region3: #{tpu_custom_call.1} parent=1 // pred_check_branch
      %9 = sbr.rel (0) target = $region5
    $region4: #{tpu_custom_call.1} parent=1 // pred_region
      %s11 = ssub.s32 384, 384
      %12 = vsyncadd [#allocation3], %s11
      %s13 = sshll.u32 [#allocation2], 4
      %s14 = int_to_ptr.vmem [resolvable:$true] %s13
      %19 = dma.hbm_to_vmem [thread:$0]  %s0, 384, %s14, [#allocation3], 128, 128, 8
    $region5: #{tpu_custom_call.1} parent=1 // pred_fallthru
      _
    // Predicated region
    $region6: #{tpu_custom_call.1} parent=1 // pred_check
      _
    $region7: #{tpu_custom_call.1} parent=1 // pred_check_branch
      %21 = sbr.rel (0) target = $region9
    $region8: #{tpu_custom_call.1} parent=1 // pred_region
      %22 = dma.done [#allocation3], 384
    $region9: #{tpu_custom_call.1} parent=1 // pred_fallthru
      _
    %s23 = smul.u32 0, 8
    %s24 = scalar_lea.vmem [#allocation2], %s23
    %v25 = vld [vmem:[%s24] sm:$0xff]
    %s26 = sadd.s32 %s23, 8
    %s27 = scalar_lea.vmem [#allocation2], %s26
    %v28 = vld [vmem:[%s27] sm:$0xff]
    %s29 = sadd.s32 %s23, 16
    %s30 = scalar_lea.vmem [#allocation2], %s29
    %v31 = vld [vmem:[%s30] sm:$0xff]
    %v32 = vmul.f32 %v25, 14.285714
    %v33 = vmul.f32 %v28, 14.285714
    %v34 = vmul.f32 %v31, 14.285714
    %v35 = vmul.f32 %v32, %v28
    %36 = vadd.xlane.f32.xlu0 %v35
    %v37 = vpop.xlane.xlu0 %36
    %v38 = vmul.f32 %v32, %v31
    %39 = vadd.xlane.f32.xlu0 %v38
    %v40 = vpop.xlane.xlu0 %39
    %v41 = vmul.f32 %v33, %v31
    %42 = vadd.xlane.f32.xlu0 %v41
    %v43 = vpop.xlane.xlu0 %42
    %s44 = scalar_lea.vmem [#allocation2], 8
    %v45 = vld [vmem:[%s44] sm:$0xff]
    %46 = vmatprep.subr.mxu0 0.0
    %47 = vmatpush1.xpose.msra.mxu0 %v45
    %48 = vmatprep.subr.mxu0 0.0
    %49 = vmatpush1.xpose.msra.mxu0 0.0
    %50 = vmatprep.subr.mxu0 0.0
    %51 = vmatpush1.xpose.msra.mxu0 0.0
    %52 = vmatprep.subr.mxu0 0.0
    %53 = vmatpush1.xpose.msra.mxu0 0.0
    %54 = vmatprep.subr.mxu0 0.0
    %55 = vmatpush1.xpose.msra.mxu0 0.0
    %56 = vmatprep.subr.mxu0 0.0
    %57 = vmatpush1.xpose.msra.mxu0 0.0
    %58 = vmatprep.subr.mxu0 0.0
    %59 = vmatpush1.xpose.msra.mxu0 0.0
    %60 = vmatprep.subr.mxu0 0.0
    %61 = vmatpush1.xpose.msra.mxu0 0.0
    %62 = vmatprep.subr.mxu0 0.0
    %63 = vmatpush1.xpose.msra.mxu0 0.0
    %64 = vmatprep.subr.mxu0 0.0
    %65 = vmatpush1.xpose.msra.mxu0 0.0
    %66 = vmatprep.subr.mxu0 0.0
    %67 = vmatpush1.xpose.msra.mxu0 0.0
    %68 = vmatprep.subr.mxu0 0.0
    %69 = vmatpush1.xpose.msra.mxu0 0.0
    %70 = vmatprep.subr.mxu0 0.0
    %71 = vmatpush1.xpose.msra.mxu0 0.0
    %72 = vmatprep.subr.mxu0 0.0
    %73 = vmatpush1.xpose.msra.mxu0 0.0
    %74 = vmatprep.subr.mxu0 0.0
    %75 = vmatpush1.xpose.msra.mxu0 0.0
    %76 = vmatprep.subr.mxu0 0.0
    %77 = vmatpush1.xpose.msra.mxu0 0.0
    %78 = vmatprep.subr.mxu0 0.0
    %79 = vmatpush1.xpose.msra.mxu0 0.0
    %80 = vmatprep.subr.mxu0 0.0
    %81 = vmatpush1.xpose.msra.mxu0 0.0
    %82 = vmatprep.subr.mxu0 0.0
    %83 = vmatpush1.xpose.msra.mxu0 0.0
    %84 = vmatprep.subr.mxu0 0.0
    %85 = vmatpush1.xpose.msra.mxu0 0.0
    %86 = vmatprep.subr.mxu0 0.0
    %87 = vmatpush1.xpose.msra.mxu0 0.0
    %88 = vmatprep.subr.mxu0 0.0
    %89 = vmatpush1.xpose.msra.mxu0 0.0
    %90 = vmatprep.subr.mxu0 0.0
    %91 = vmatpush1.xpose.msra.mxu0 0.0
    %92 = vmatprep.subr.mxu0 0.0
    %93 = vmatpush1.xpose.msra.mxu0 0.0
    %94 = vmatprep.subr.mxu0 0.0
    %95 = vmatpush1.xpose.msra.mxu0 0.0
    %96 = vmatprep.subr.mxu0 0.0
    %97 = vmatpush1.xpose.msra.mxu0 0.0
    %98 = vmatprep.subr.mxu0 0.0
    %99 = vmatpush1.xpose.msra.mxu0 0.0
    %100 = vmatprep.subr.mxu0 0.0
    %101 = vmatpush1.xpose.msra.mxu0 0.0
    %102 = vmatprep.subr.mxu0 0.0
    %103 = vmatpush1.xpose.msra.mxu0 0.0
    %104 = vmatprep.subr.mxu0 0.0
    %105 = vmatpush1.xpose.msra.mxu0 0.0
    %106 = vmatprep.subr.mxu0 0.0
    %107 = vmatpush1.xpose.msra.mxu0 0.0
    %108 = vmatprep.subr.mxu0 0.0
    %109 = vmatpush1.xpose.msra.mxu0 0.0
    %110 = vmatprep.mubr.f32.mxu0 0.0
    %111 = vmatmul.mubr.f32.gmra.mrb[0].mxu0 %v32
    %v112 = vpop.f32.mrb[0].mxu0
    %v113 = vadd.f32 0.0, %v112
    %v114 = vpop.f32.mrb[0].mxu0
    %115 = vdwg.mxu0
    %vm116 = vcmask 64512
    %v117 = vsel %vm116, %v113, -inf
    %118 = vmax.xlane.f32.xlu0 %v117
    %v119 = vpop.xlane.xlu0 %118
    %v120 = vsub.f32 %v37, %v119
    %v121 = vadd.f32 %v120, 0.0
    %v122 = vsub.f32 %v113, %v119
    %v123 = vmul.f32 %v122, 1.442695
    %v124 = vpow.pop %v123
    %v125 = vsel %vm116, %v124, 0.0
    %126 = vadd.xlane.f32.xlu0 %v125
    %v127 = vpop.xlane.xlu0 %126
    %v128 = vadd.f32 %v127, 0.0
    %s129 = scalar_lea.vmem [#allocation2], 16
    %v130 = vld [vmem:[%s129] sm:$0xff]
    %131 = vmatprep.subr.mxu0 0.0
    %132 = vmatpush1.xpose.msra.mxu0 %v130
    %133 = vmatprep.subr.mxu0 0.0
    %134 = vmatpush1.xpose.msra.mxu0 0.0
    %135 = vmatprep.subr.mxu0 0.0
    %136 = vmatpush1.xpose.msra.mxu0 0.0
    %137 = vmatprep.subr.mxu0 0.0
    %138 = vmatpush1.xpose.msra.mxu0 0.0
    %139 = vmatprep.subr.mxu0 0.0
    %140 = vmatpush1.xpose.msra.mxu0 0.0
    %141 = vmatprep.subr.mxu0 0.0
    %142 = vmatpush1.xpose.msra.mxu0 0.0
    %143 = vmatprep.subr.mxu0 0.0
    %144 = vmatpush1.xpose.msra.mxu0 0.0
    %145 = vmatprep.subr.mxu0 0.0
    %146 = vmatpush1.xpose.msra.mxu0 0.0
    %147 = vmatprep.subr.mxu0 0.0
    %148 = vmatpush1.xpose.msra.mxu0 0.0
    %149 = vmatprep.subr.mxu0 0.0
    %150 = vmatpush1.xpose.msra.mxu0 0.0
    %151 = vmatprep.subr.mxu0 0.0
    %152 = vmatpush1.xpose.msra.mxu0 0.0
    %153 = vmatprep.subr.mxu0 0.0
    %154 = vmatpush1.xpose.msra.mxu0 0.0
    %155 = vmatprep.subr.mxu0 0.0
    %156 = vmatpush1.xpose.msra.mxu0 0.0
    %157 = vmatprep.subr.mxu0 0.0
    %158 = vmatpush1.xpose.msra.mxu0 0.0
    %159 = vmatprep.subr.mxu0 0.0
    %160 = vmatpush1.xpose.msra.mxu0 0.0
    %161 = vmatprep.subr.mxu0 0.0
    %162 = vmatpush1.xpose.msra.mxu0 0.0
    %163 = vmatprep.subr.mxu0 0.0
    %164 = vmatpush1.xpose.msra.mxu0 0.0
    %165 = vmatprep.subr.mxu0 0.0
    %166 = vmatpush1.xpose.msra.mxu0 0.0
    %167 = vmatprep.subr.mxu0 0.0
    %168 = vmatpush1.xpose.msra.mxu0 0.0
    %169 = vmatprep.subr.mxu0 0.0
    %170 = vmatpush1.xpose.msra.mxu0 0.0
    %171 = vmatprep.subr.mxu0 0.0
    %172 = vmatpush1.xpose.msra.mxu0 0.0
    %173 = vmatprep.subr.mxu0 0.0
    %174 = vmatpush1.xpose.msra.mxu0 0.0
    %175 = vmatprep.subr.mxu0 0.0
    %176 = vmatpush1.xpose.msra.mxu0 0.0
    %177 = vmatprep.subr.mxu0 0.0
    %178 = vmatpush1.xpose.msra.mxu0 0.0
    %179 = vmatprep.subr.mxu0 0.0
    %180 = vmatpush1.xpose.msra.mxu0 0.0
    %181 = vmatprep.subr.mxu0 0.0
    %182 = vmatpush1.xpose.msra.mxu0 0.0
    %183 = vmatprep.subr.mxu0 0.0
    %184 = vmatpush1.xpose.msra.mxu0 0.0
    %185 = vmatprep.subr.mxu0 0.0
    %186 = vmatpush1.xpose.msra.mxu0 0.0
    %187 = vmatprep.subr.mxu0 0.0
    %188 = vmatpush1.xpose.msra.mxu0 0.0
    %189 = vmatprep.subr.mxu0 0.0
    %190 = vmatpush1.xpose.msra.mxu0 0.0
    %191 = vmatprep.subr.mxu0 0.0
    %192 = vmatpush1.xpose.msra.mxu0 0.0
    %193 = vmatprep.subr.mxu0 0.0
    %194 = vmatpush1.xpose.msra.mxu0 0.0
    %195 = vmatprep.mubr.f32.mxu0 0.0
    %196 = vmatmul.mubr.f32.gmra.mrb[0].mxu0 %v32
    %v197 = vpop.f32.mrb[0].mxu0
    %v198 = vadd.f32 0.0, %v197
    %v199 = vpop.f32.mrb[0].mxu0
    %200 = vdwg.mxu0
    %v201 = vsel %vm116, %v198, -inf
    %202 = vmax.xlane.f32.xlu0 %v201
    %v203 = vpop.xlane.xlu0 %202
    %v204 = vsub.f32 %v40, %v203
    %v205 = vadd.f32 %v121, %v204
    %v206 = vsub.f32 %v198, %v203
    %v207 = vmul.f32 %v206, 1.442695
    %v208 = vpow.pop %v207
    %v209 = vsel %vm116, %v208, 0.0
    %210 = vadd.xlane.f32.xlu0 %v209
    %v211 = vpop.xlane.xlu0 %210
    %v212 = vadd.f32 %v128, %v211
    %v213 = vadd.f32 %v212, 1e-06
    %v214 = vlog2.pop %v213
    %v215 = vmul.f32 %v214, 0.6931472
    %v216 = vmul.f32 %v215, 2.0
    %v217 = vsub.f32 %v205, %v216
    %v218 = vadd.f32 %v217, 0.0
    %219 = vmatprep.subr.mxu0 0.0
    %220 = vmatpush1.xpose.msra.mxu0 %v130
    %221 = vmatprep.subr.mxu0 0.0
    %222 = vmatpush1.xpose.msra.mxu0 0.0
    %223 = vmatprep.subr.mxu0 0.0
    %224 = vmatpush1.xpose.msra.mxu0 0.0
    %225 = vmatprep.subr.mxu0 0.0
    %226 = vmatpush1.xpose.msra.mxu0 0.0
    %227 = vmatprep.subr.mxu0 0.0
    %228 = vmatpush1.xpose.msra.mxu0 0.0
    %229 = vmatprep.subr.mxu0 0.0
    %230 = vmatpush1.xpose.msra.mxu0 0.0
    %231 = vmatprep.subr.mxu0 0.0
    %232 = vmatpush1.xpose.msra.mxu0 0.0
    %233 = vmatprep.subr.mxu0 0.0
    %234 = vmatpush1.xpose.msra.mxu0 0.0
    %235 = vmatprep.subr.mxu0 0.0
    %236 = vmatpush1.xpose.msra.mxu0 0.0
    %237 = vmatprep.subr.mxu0 0.0
    %238 = vmatpush1.xpose.msra.mxu0 0.0
    %239 = vmatprep.subr.mxu0 0.0
    %240 = vmatpush1.xpose.msra.mxu0 0.0
    %241 = vmatprep.subr.mxu0 0.0
    %242 = vmatpush1.xpose.msra.mxu0 0.0
    %243 = vmatprep.subr.mxu0 0.0
    %244 = vmatpush1.xpose.msra.mxu0 0.0
    %245 = vmatprep.subr.mxu0 0.0
    %246 = vmatpush1.xpose.msra.mxu0 0.0
    %247 = vmatprep.subr.mxu0 0.0
    %248 = vmatpush1.xpose.msra.mxu0 0.0
    %249 = vmatprep.subr.mxu0 0.0
    %250 = vmatpush1.xpose.msra.mxu0 0.0
    %251 = vmatprep.subr.mxu0 0.0
    %252 = vmatpush1.xpose.msra.mxu0 0.0
    %253 = vmatprep.subr.mxu0 0.0
    %254 = vmatpush1.xpose.msra.mxu0 0.0
    %255 = vmatprep.subr.mxu0 0.0
    %256 = vmatpush1.xpose.msra.mxu0 0.0
    %257 = vmatprep.subr.mxu0 0.0
    %258 = vmatpush1.xpose.msra.mxu0 0.0
    %259 = vmatprep.subr.mxu0 0.0
    %260 = vmatpush1.xpose.msra.mxu0 0.0
    %261 = vmatprep.subr.mxu0 0.0
    %262 = vmatpush1.xpose.msra.mxu0 0.0
    %263 = vmatprep.subr.mxu0 0.0
    %264 = vmatpush1.xpose.msra.mxu0 0.0
    %265 = vmatprep.subr.mxu0 0.0
    %266 = vmatpush1.xpose.msra.mxu0 0.0
    %267 = vmatprep.subr.mxu0 0.0
    %268 = vmatpush1.xpose.msra.mxu0 0.0
    %269 = vmatprep.subr.mxu0 0.0
    %270 = vmatpush1.xpose.msra.mxu0 0.0
    %271 = vmatprep.subr.mxu0 0.0
    %272 = vmatpush1.xpose.msra.mxu0 0.0
    %273 = vmatprep.subr.mxu0 0.0
    %274 = vmatpush1.xpose.msra.mxu0 0.0
    %275 = vmatprep.subr.mxu0 0.0
    %276 = vmatpush1.xpose.msra.mxu0 0.0
    %277 = vmatprep.subr.mxu0 0.0
    %278 = vmatpush1.xpose.msra.mxu0 0.0
    %279 = vmatprep.subr.mxu0 0.0
    %280 = vmatpush1.xpose.msra.mxu0 0.0
    %281 = vmatprep.subr.mxu0 0.0
    %282 = vmatpush1.xpose.msra.mxu0 0.0
    %283 = vmatprep.mubr.f32.mxu0 0.0
    %284 = vmatmul.mubr.f32.gmra.mrb[0].mxu0 %v33
    %v285 = vpop.f32.mrb[0].mxu0
    %v286 = vadd.f32 0.0, %v285
    %v287 = vpop.f32.mrb[0].mxu0
    %288 = vdwg.mxu0
    %v289 = vsel %vm116, %v286, -inf
    %290 = vmax.xlane.f32.xlu0 %v289
    %v291 = vpop.xlane.xlu0 %290
    %v292 = vsub.f32 %v43, %v291
    %v293 = vadd.f32 %v292, 0.0
    %v294 = vsub.f32 %v286, %v291
    %v295 = vmul.f32 %v294, 1.442695
    %v296 = vpow.pop %v295
    %v297 = vsel %vm116, %v296, 0.0
    %298 = vadd.xlane.f32.xlu0 %v297
    %v299 = vpop.xlane.xlu0 %298
    %v300 = vadd.f32 %v299, 0.0
    %v301 = vld [vmem:[#allocation2] sm:$0xff]
    %302 = vmatprep.subr.mxu0 0.0
    %303 = vmatpush1.xpose.msra.mxu0 %v301
    %304 = vmatprep.subr.mxu0 0.0
    %305 = vmatpush1.xpose.msra.mxu0 0.0
    %306 = vmatprep.subr.mxu0 0.0
    %307 = vmatpush1.xpose.msra.mxu0 0.0
    %308 = vmatprep.subr.mxu0 0.0
    %309 = vmatpush1.xpose.msra.mxu0 0.0
    %310 = vmatprep.subr.mxu0 0.0
    %311 = vmatpush1.xpose.msra.mxu0 0.0
    %312 = vmatprep.subr.mxu0 0.0
    %313 = vmatpush1.xpose.msra.mxu0 0.0
    %314 = vmatprep.subr.mxu0 0.0
    %315 = vmatpush1.xpose.msra.mxu0 0.0
    %316 = vmatprep.subr.mxu0 0.0
    %317 = vmatpush1.xpose.msra.mxu0 0.0
    %318 = vmatprep.subr.mxu0 0.0
    %319 = vmatpush1.xpose.msra.mxu0 0.0
    %320 = vmatprep.subr.mxu0 0.0
    %321 = vmatpush1.xpose.msra.mxu0 0.0
    %322 = vmatprep.subr.mxu0 0.0
    %323 = vmatpush1.xpose.msra.mxu0 0.0
    %324 = vmatprep.subr.mxu0 0.0
    %325 = vmatpush1.xpose.msra.mxu0 0.0
    %326 = vmatprep.subr.mxu0 0.0
    %327 = vmatpush1.xpose.msra.mxu0 0.0
    %328 = vmatprep.subr.mxu0 0.0
    %329 = vmatpush1.xpose.msra.mxu0 0.0
    %330 = vmatprep.subr.mxu0 0.0
    %331 = vmatpush1.xpose.msra.mxu0 0.0
    %332 = vmatprep.subr.mxu0 0.0
    %333 = vmatpush1.xpose.msra.mxu0 0.0
    %334 = vmatprep.subr.mxu0 0.0
    %335 = vmatpush1.xpose.msra.mxu0 0.0
    %336 = vmatprep.subr.mxu0 0.0
    %337 = vmatpush1.xpose.msra.mxu0 0.0
    %338 = vmatprep.subr.mxu0 0.0
    %339 = vmatpush1.xpose.msra.mxu0 0.0
    %340 = vmatprep.subr.mxu0 0.0
    %341 = vmatpush1.xpose.msra.mxu0 0.0
    %342 = vmatprep.subr.mxu0 0.0
    %343 = vmatpush1.xpose.msra.mxu0 0.0
    %344 = vmatprep.subr.mxu0 0.0
    %345 = vmatpush1.xpose.msra.mxu0 0.0
    %346 = vmatprep.subr.mxu0 0.0
    %347 = vmatpush1.xpose.msra.mxu0 0.0
    %348 = vmatprep.subr.mxu0 0.0
    %349 = vmatpush1.xpose.msra.mxu0 0.0
    %350 = vmatprep.subr.mxu0 0.0
    %351 = vmatpush1.xpose.msra.mxu0 0.0
    %352 = vmatprep.subr.mxu0 0.0
    %353 = vmatpush1.xpose.msra.mxu0 0.0
    %354 = vmatprep.subr.mxu0 0.0
    %355 = vmatpush1.xpose.msra.mxu0 0.0
    %356 = vmatprep.subr.mxu0 0.0
    %357 = vmatpush1.xpose.msra.mxu0 0.0
    %358 = vmatprep.subr.mxu0 0.0
    %359 = vmatpush1.xpose.msra.mxu0 0.0
    %360 = vmatprep.subr.mxu0 0.0
    %361 = vmatpush1.xpose.msra.mxu0 0.0
    %362 = vmatprep.subr.mxu0 0.0
    %363 = vmatpush1.xpose.msra.mxu0 0.0
    %364 = vmatprep.subr.mxu0 0.0
    %365 = vmatpush1.xpose.msra.mxu0 0.0
    %366 = vmatprep.mubr.f32.mxu0 0.0
    %367 = vmatmul.mubr.f32.gmra.mrb[0].mxu0 %v33
    %v368 = vpop.f32.mrb[0].mxu0
    %v369 = vadd.f32 0.0, %v368
    %v370 = vpop.f32.mrb[0].mxu0
    %371 = vdwg.mxu0
    %v372 = vsel %vm116, %v369, -inf
    %373 = vmax.xlane.f32.xlu0 %v372
    %v374 = vpop.xlane.xlu0 %373
    %v375 = vsub.f32 %v37, %v374
    %v376 = vadd.f32 %v293, %v375
    %v377 = vsub.f32 %v369, %v374
    %v378 = vmul.f32 %v377, 1.442695
    %v379 = vpow.pop %v378
    %v380 = vsel %vm116, %v379, 0.0
    %381 = vadd.xlane.f32.xlu0 %v380
    %v382 = vpop.xlane.xlu0 %381
    %v383 = vadd.f32 %v300, %v382
    %v384 = vadd.f32 %v383, 1e-06
    %v385 = vlog2.pop %v384
    %v386 = vmul.f32 %v385, 0.6931472
    %v387 = vmul.f32 %v386, 2.0
    %v388 = vsub.f32 %v376, %v387
    %v389 = vadd.f32 %v218, %v388
    %390 = vmatprep.subr.mxu0 0.0
    %391 = vmatpush1.xpose.msra.mxu0 %v301
    %392 = vmatprep.subr.mxu0 0.0
    %393 = vmatpush1.xpose.msra.mxu0 0.0
    %394 = vmatprep.subr.mxu0 0.0
    %395 = vmatpush1.xpose.msra.mxu0 0.0
    %396 = vmatprep.subr.mxu0 0.0
    %397 = vmatpush1.xpose.msra.mxu0 0.0
    %398 = vmatprep.subr.mxu0 0.0
    %399 = vmatpush1.xpose.msra.mxu0 0.0
    %400 = vmatprep.subr.mxu0 0.0
    %401 = vmatpush1.xpose.msra.mxu0 0.0
    %402 = vmatprep.subr.mxu0 0.0
    %403 = vmatpush1.xpose.msra.mxu0 0.0
    %404 = vmatprep.subr.mxu0 0.0
    %405 = vmatpush1.xpose.msra.mxu0 0.0
    %406 = vmatprep.subr.mxu0 0.0
    %407 = vmatpush1.xpose.msra.mxu0 0.0
    %408 = vmatprep.subr.mxu0 0.0
    %409 = vmatpush1.xpose.msra.mxu0 0.0
    %410 = vmatprep.subr.mxu0 0.0
    %411 = vmatpush1.xpose.msra.mxu0 0.0
    %412 = vmatprep.subr.mxu0 0.0
    %413 = vmatpush1.xpose.msra.mxu0 0.0
    %414 = vmatprep.subr.mxu0 0.0
    %415 = vmatpush1.xpose.msra.mxu0 0.0
    %416 = vmatprep.subr.mxu0 0.0
    %417 = vmatpush1.xpose.msra.mxu0 0.0
    %418 = vmatprep.subr.mxu0 0.0
    %419 = vmatpush1.xpose.msra.mxu0 0.0
    %420 = vmatprep.subr.mxu0 0.0
    %421 = vmatpush1.xpose.msra.mxu0 0.0
    %422 = vmatprep.subr.mxu0 0.0
    %423 = vmatpush1.xpose.msra.mxu0 0.0
    %424 = vmatprep.subr.mxu0 0.0
    %425 = vmatpush1.xpose.msra.mxu0 0.0
    %426 = vmatprep.subr.mxu0 0.0
    %427 = vmatpush1.xpose.msra.mxu0 0.0
    %428 = vmatprep.subr.mxu0 0.0
    %429 = vmatpush1.xpose.msra.mxu0 0.0
    %430 = vmatprep.subr.mxu0 0.0
    %431 = vmatpush1.xpose.msra.mxu0 0.0
    %432 = vmatprep.subr.mxu0 0.0
    %433 = vmatpush1.xpose.msra.mxu0 0.0
    %434 = vmatprep.subr.mxu0 0.0
    %435 = vmatpush1.xpose.msra.mxu0 0.0
    %436 = vmatprep.subr.mxu0 0.0
    %437 = vmatpush1.xpose.msra.mxu0 0.0
    %438 = vmatprep.subr.mxu0 0.0
    %439 = vmatpush1.xpose.msra.mxu0 0.0
    %440 = vmatprep.subr.mxu0 0.0
    %441 = vmatpush1.xpose.msra.mxu0 0.0
    %442 = vmatprep.subr.mxu0 0.0
    %443 = vmatpush1.xpose.msra.mxu0 0.0
    %444 = vmatprep.subr.mxu0 0.0
    %445 = vmatpush1.xpose.msra.mxu0 0.0
    %446 = vmatprep.subr.mxu0 0.0
    %447 = vmatpush1.xpose.msra.mxu0 0.0
    %448 = vmatprep.subr.mxu0 0.0
    %449 = vmatpush1.xpose.msra.mxu0 0.0
    %450 = vmatprep.subr.mxu0 0.0
    %451 = vmatpush1.xpose.msra.mxu0 0.0
    %452 = vmatprep.subr.mxu0 0.0
    %453 = vmatpush1.xpose.msra.mxu0 0.0
    %454 = vmatprep.mubr.f32.mxu0 0.0
    %455 = vmatmul.mubr.f32.gmra.mrb[0].mxu0 %v34
    %v456 = vpop.f32.mrb[0].mxu0
    %v457 = vadd.f32 0.0, %v456
    %v458 = vpop.f32.mrb[0].mxu0
    %459 = vdwg.mxu0
    %v460 = vsel %vm116, %v457, -inf
    %461 = vmax.xlane.f32.xlu0 %v460
    %v462 = vpop.xlane.xlu0 %461
    %v463 = vsub.f32 %v40, %v462
    %v464 = vadd.f32 %v463, 0.0
    %v465 = vsub.f32 %v457, %v462
    %v466 = vmul.f32 %v465, 1.442695
    %v467 = vpow.pop %v466
    %v468 = vsel %vm116, %v467, 0.0
    %469 = vadd.xlane.f32.xlu0 %v468
    %v470 = vpop.xlane.xlu0 %469
    %v471 = vadd.f32 %v470, 0.0
    %472 = vmatprep.subr.mxu0 0.0
    %473 = vmatpush1.xpose.msra.mxu0 %v45
    %474 = vmatprep.subr.mxu0 0.0
    %475 = vmatpush1.xpose.msra.mxu0 0.0
    %476 = vmatprep.subr.mxu0 0.0
    %477 = vmatpush1.xpose.msra.mxu0 0.0
    %478 = vmatprep.subr.mxu0 0.0
    %479 = vmatpush1.xpose.msra.mxu0 0.0
    %480 = vmatprep.subr.mxu0 0.0
    %481 = vmatpush1.xpose.msra.mxu0 0.0
    %482 = vmatprep.subr.mxu0 0.0
    %483 = vmatpush1.xpose.msra.mxu0 0.0
    %484 = vmatprep.subr.mxu0 0.0
    %485 = vmatpush1.xpose.msra.mxu0 0.0
    %486 = vmatprep.subr.mxu0 0.0
    %487 = vmatpush1.xpose.msra.mxu0 0.0
    %488 = vmatprep.subr.mxu0 0.0
    %489 = vmatpush1.xpose.msra.mxu0 0.0
    %490 = vmatprep.subr.mxu0 0.0
    %491 = vmatpush1.xpose.msra.mxu0 0.0
    %492 = vmatprep.subr.mxu0 0.0
    %493 = vmatpush1.xpose.msra.mxu0 0.0
    %494 = vmatprep.subr.mxu0 0.0
    %495 = vmatpush1.xpose.msra.mxu0 0.0
    %496 = vmatprep.subr.mxu0 0.0
    %497 = vmatpush1.xpose.msra.mxu0 0.0
    %498 = vmatprep.subr.mxu0 0.0
    %499 = vmatpush1.xpose.msra.mxu0 0.0
    %500 = vmatprep.subr.mxu0 0.0
    %501 = vmatpush1.xpose.msra.mxu0 0.0
    %502 = vmatprep.subr.mxu0 0.0
    %503 = vmatpush1.xpose.msra.mxu0 0.0
    %504 = vmatprep.subr.mxu0 0.0
    %505 = vmatpush1.xpose.msra.mxu0 0.0
    %506 = vmatprep.subr.mxu0 0.0
    %507 = vmatpush1.xpose.msra.mxu0 0.0
    %508 = vmatprep.subr.mxu0 0.0
    %509 = vmatpush1.xpose.msra.mxu0 0.0
    %510 = vmatprep.subr.mxu0 0.0
    %511 = vmatpush1.xpose.msra.mxu0 0.0
    %512 = vmatprep.subr.mxu0 0.0
    %513 = vmatpush1.xpose.msra.mxu0 0.0
    %514 = vmatprep.subr.mxu0 0.0
    %515 = vmatpush1.xpose.msra.mxu0 0.0
    %516 = vmatprep.subr.mxu0 0.0
    %517 = vmatpush1.xpose.msra.mxu0 0.0
    %518 = vmatprep.subr.mxu0 0.0
    %519 = vmatpush1.xpose.msra.mxu0 0.0
    %520 = vmatprep.subr.mxu0 0.0
    %521 = vmatpush1.xpose.msra.mxu0 0.0
    %522 = vmatprep.subr.mxu0 0.0
    %523 = vmatpush1.xpose.msra.mxu0 0.0
    %524 = vmatprep.subr.mxu0 0.0
    %525 = vmatpush1.xpose.msra.mxu0 0.0
    %526 = vmatprep.subr.mxu0 0.0
    %527 = vmatpush1.xpose.msra.mxu0 0.0
    %528 = vmatprep.subr.mxu0 0.0
    %529 = vmatpush1.xpose.msra.mxu0 0.0
    %530 = vmatprep.subr.mxu0 0.0
    %531 = vmatpush1.xpose.msra.mxu0 0.0
    %532 = vmatprep.subr.mxu0 0.0
    %533 = vmatpush1.xpose.msra.mxu0 0.0
    %534 = vmatprep.subr.mxu0 0.0
    %535 = vmatpush1.xpose.msra.mxu0 0.0
    %536 = vmatprep.mubr.f32.mxu0 0.0
    %537 = vmatmul.mubr.f32.gmra.mrb[0].mxu0 %v34
    %v538 = vpop.f32.mrb[0].mxu0
    %v539 = vadd.f32 0.0, %v538
    %v540 = vpop.f32.mrb[0].mxu0
    %541 = vdwg.mxu0
    %v542 = vsel %vm116, %v539, -inf
    %543 = vmax.xlane.f32.xlu0 %v542
    %v544 = vpop.xlane.xlu0 %543
    %v545 = vsub.f32 %v43, %v544
    %v546 = vadd.f32 %v464, %v545
    %v547 = vsub.f32 %v539, %v544
    %v548 = vmul.f32 %v547, 1.442695
    %v549 = vpow.pop %v548
    %v550 = vsel %vm116, %v549, 0.0
    %551 = vadd.xlane.f32.xlu0 %v550
    %v552 = vpop.xlane.xlu0 %551
    %v553 = vadd.f32 %v471, %v552
    %v554 = vadd.f32 %v553, 1e-06
    %v555 = vlog2.pop %v554
    %v556 = vmul.f32 %v555, 0.6931472
    %v557 = vmul.f32 %v556, 2.0
    %v558 = vsub.f32 %v546, %v557
    %v559 = vadd.f32 %v389, %v558
    %vm560 = vcmask 7168
    %v561 = vsel %vm560, %v559, 0.0
    %562 = vadd.xlane.f32.xlu0 %v561
    %v563 = vpop.xlane.xlu0 %562
    %v564 = vrot.slane %v563, 4
    %v565 = vadd.f32 %v563, %v564
    %v566 = vrot.slane %v565, 2
    %v567 = vadd.f32 %v565, %v566
    %v568 = vrot.slane %v567, 1
    %v569 = vadd.f32 %v567, %v568
    %s570 = vtos %v569
    %v571 = vstv %s570
    %572 = vst [vmem:[#allocation5] sm:$0xff] %v571
    // Predicated region
    $region10: #{tpu_custom_call.1} parent=1 // pred_check
      _
    $region11: #{tpu_custom_call.1} parent=1 // pred_check_branch
      %574 = sbr.rel (0) target = $region13
    $region12: #{tpu_custom_call.1} parent=1 // pred_region
      %s576 = ssub.s32 128, 128
      %577 = vsyncadd [#allocation4], %s576
      %s579 = sshll.u32 [#allocation5], 4
      %s580 = int_to_ptr.vmem [resolvable:$true] %s579
      %582 = dma.vmem_to_hbm [thread:$0]  %s580, 128, %s1, [#allocation4]
    $region13: #{tpu_custom_call.1} parent=1 // pred_fallthru
      _
    // Predicated region
    $region14: #{tpu_custom_call.1} parent=1 // pred_check
      _
    $region15: #{tpu_custom_call.1} parent=1 // pred_check_branch
      %584 = sbr.rel (0) target = $region17
    $region16: #{tpu_custom_call.1} parent=1 // pred_region
      %585 = dma.done [#allocation4], 128
    $region17: #{tpu_custom_call.1} parent=1 // pred_fallthru
      _
    %586 = vsyncpa [#allocation3], 1
    %587 = vsyncpa [#allocation4], 1

</llo_original>
